<compile_context>
chip_gen: v5e
topology: v5e:2x2
jax: 0.10.0
libtpu: 0.0.40
codegen_flags: <defaults>
</compile_context>

<pallas_src>
import functools

import jax
import jax.numpy as jnp
from jax import lax
from jax.experimental import pallas as pl
from jax.experimental.pallas import tpu as pltpu


def lstm_dqn_kernel(x_ref, w_ih_ref, w_hh_ref, w_fc_ref, b_lstm_ref, b_fc_ref,
                    h0_ref, c0_ref,
                    q_ref, h_out_ref, c_out_ref,
                    h_scr, c_scr, xw_scr, *, unroll):
    """One (batch block, time chunk) grid point.

    x_ref:     (St, Bb, D)   raw input chunk, time-major
    w_ih_ref:  (D, 4H)  bf16 resident input->gates weights
    w_hh_ref:  (H, 4H)  bf16 resident hidden->gates weights
    w_fc_ref:  (H, A)   bf16 resident final linear weights
    b_lstm_ref:(1, 4H)  f32  combined LSTM bias (b_ih + b_hh)
    b_fc_ref:  (1, A)   f32  final linear bias
    h0_ref/c0_ref: (Bb, H)   initial states (used only at t_chunk == 0)
    q_ref/h_out_ref/c_out_ref: outputs (written only at the last time chunk)
    h_scr/c_scr: (Bb, H) f32 VMEM scratch carrying the state across time chunks
    xw_scr:    (St, Bb, 4H) f32 VMEM scratch holding the per-chunk input projection
    """
    t_chunk = pl.program_id(1)
    n_chunks = pl.num_programs(1)
    St, Bb, D = x_ref.shape
    H = h0_ref.shape[1]

    # Initialize the carried state at the first time chunk of each batch block.
    @pl.when(t_chunk == 0)
    def _():
        h_scr[...] = h0_ref[...]
        c_scr[...] = c0_ref[...]

    # Per-chunk input projection — OFF the serial critical path:
    # one (St*Bb, D) @ (D, 4H) bf16 MXU matmul with the combined bias folded in.
    x_chunk = x_ref[...].reshape(St * Bb, D).astype(jnp.bfloat16)
    xw = jnp.dot(x_chunk, w_ih_ref[...],
                 preferred_element_type=jnp.float32) + b_lstm_ref[...]
    xw_scr[...] = xw.reshape(St, Bb, 4 * H)

    w_hh = w_hh_ref[...]  # bf16, resident in VMEM

    def step(t, carry):
        h, c = carry
        # Only the recurrent matmul + gate math sit on the serial dependent chain.
        z = xw_scr[t] + jnp.dot(h.astype(jnp.bfloat16), w_hh,
                                preferred_element_type=jnp.float32)   # (Bb, 4H) f32
        sig = jax.nn.sigmoid(z)                 # full-width EUP pass: i, f, (g), o
        tng = jnp.tanh(z[:, 2 * H:4 * H])       # only the lane group containing g
        i_g = sig[:, 0 * H:1 * H]
        f_g = sig[:, 1 * H:2 * H]
        g_g = tng[:, 0:H]
        o_g = sig[:, 3 * H:4 * H]
        c_new = f_g * c + i_g * g_g
        h_new = o_g * jnp.tanh(c_new)
        return (h_new, c_new)

    h, c = lax.fori_loop(0, St, step, (h_scr[...], c_scr[...]), unroll=unroll)

    # Carry state forward to the next time chunk.
    h_scr[...] = h
    c_scr[...] = c

    # Final outputs only once, after the last chunk (output blocks are resident
    # across the "arbitrary" time axis).
    @pl.when(t_chunk == n_chunks - 1)
    def _():
        q = jnp.dot(h.astype(jnp.bfloat16), w_fc_ref[...],
                    preferred_element_type=jnp.float32) + b_fc_ref[...]
        q_ref[...] = q.astype(q_ref.dtype)
        h_out_ref[...] = h.astype(h_out_ref.dtype)
        c_out_ref[...] = c.astype(c_out_ref.dtype)


def init_lstm_dqn_params(key, state_dim, action_dim, hidden_size):
    """Deterministic parameter init (PyTorch-style uniform(-1/sqrt(H), 1/sqrt(H)))."""
    ks = jax.random.split(key, 6)
    bound = 1.0 / jnp.sqrt(jnp.float32(hidden_size))

    def u(k, shape):
        return jax.random.uniform(k, shape, jnp.float32, -bound, bound)

    return {
        # Stored already transposed for the kernel ((in, out) matmul layout).
        "w_ih": u(ks[0], (state_dim, 4 * hidden_size)),
        "w_hh": u(ks[1], (hidden_size, 4 * hidden_size)),
        "b_ih": u(ks[2], (4 * hidden_size,)),
        "b_hh": u(ks[3], (4 * hidden_size,)),
        "w_fc": u(ks[4], (hidden_size, action_dim)),
        "b_fc": u(ks[5], (action_dim,)),
    }


def _pick_batch_block(B):
    """Generation-aware batch block.

    - B <= 128 : one block, rounded up to a multiple of 8 (sublane alignment).
    - B <  512 : 128-row blocks (>=2 grid points so v7x's 2nd TensorCore gets work).
    - B >= 512 : 256-row blocks (fills the 256-row MXU on v6e/v7x).
    """
    if B <= 128:
        return ((B + 7) // 8) * 8
    if B < 512:
        return 128
    return 256


def _vmem_limit_bytes(St, bb, D, H, A):
    """Estimated VMEM footprint (with (8,128) lane padding) -> explicit limit."""
    def slab(r, c, itemsize=4):
        return ((r + 7) // 8 * 8) * ((c + 127) // 128 * 128) * itemsize

    est = 0
    est += 2 * St * slab(bb, D)                                    # x chunk, dbl-buffered
    est += 2 * (slab(D, 4 * H, 2) + slab(H, 4 * H, 2) + slab(H, A, 2))  # bf16 weights
    est += 2 * (slab(1, 4 * H) + slab(1, A))                       # biases
    est += 4 * slab(bb, H)                                         # h0 / c0 blocks
    est += 2 * (slab(bb, A) + 2 * slab(bb, H))                     # outputs
    est += 2 * slab(bb, H)                                         # h / c scratch
    est += St * slab(bb, 4 * H)                                    # xw scratch
    est += 8 * slab(bb, 4 * H)                                     # per-step temporaries
    # 2x margin, floor at 16 MiB, cap at 48 MiB (v7x has only 64 MiB physical VMEM).
    return int(min(max(2 * est, 16 << 20), 48 << 20))


def lstm_dqn_forward(x, params, hidden=None, *, batch_block=None, seq_chunk=32):
    """x: (batch, seq_len, state_dim) float32. Returns (q_values, (h_n, c_n))."""
    B, S, D = x.shape
    H = params["w_hh"].shape[0]
    A = params["w_fc"].shape[1]

    if hidden is None:
        h0 = jnp.zeros((B, H), jnp.float32)
        c0 = jnp.zeros((B, H), jnp.float32)
    else:
        h0 = hidden[0].reshape(B, H).astype(jnp.float32)
        c0 = hidden[1].reshape(B, H).astype(jnp.float32)

    # --- batch blocking (always a multiple of 8 sublanes) ---
    bb = _pick_batch_block(B) if batch_block is None else max(8, ((batch_block + 7) // 8) * 8)
    bb = min(bb, ((B + 7) // 8) * 8)
    B_pad = -(-B // bb) * bb

    # --- time chunking: St must divide S exactly (padding time would change the
    #     recurrence); take the largest divisor of S that is <= seq_chunk ---
    St = max(d for d in range(1, min(S, seq_chunk) + 1) if S % d == 0)
    n_chunks = S // St

    # Inner-loop unroll: full for short chunks, capped otherwise (vreg pressure).
    if St <= 8:
        unroll = St
    else:
        unroll = next(u for u in (8, 4, 2, 1) if St % u == 0)

    # Raw x streamed time-major; weights passed as bf16 (MXU inputs), accum stays f32.
    x_tm = jnp.transpose(x.astype(jnp.float32), (1, 0, 2))  # (S, B, D)
    if B_pad != B:
        pad = B_pad - B
        x_tm = jnp.pad(x_tm, ((0, 0), (0, pad), (0, 0)))
        h0 = jnp.pad(h0, ((0, pad), (0, 0)))
        c0 = jnp.pad(c0, ((0, pad), (0, 0)))

    w_ih_bf = params["w_ih"].astype(jnp.bfloat16)
    w_hh_bf = params["w_hh"].astype(jnp.bfloat16)
    w_fc_bf = params["w_fc"].astype(jnp.bfloat16)
    b_lstm = (params["b_ih"] + params["b_hh"]).reshape(1, 4 * H).astype(jnp.float32)
    b_fc = params["b_fc"].reshape(1, A).astype(jnp.float32)

    vmem_limit = _vmem_limit_bytes(St, bb, D, H, A)

    q, h_n, c_n = pl.pallas_call(
        functools.partial(lstm_dqn_kernel, unroll=unroll),
        out_shape=(
            jax.ShapeDtypeStruct((B_pad, A), jnp.float32),
            jax.ShapeDtypeStruct((B_pad, H), jnp.float32),
            jax.ShapeDtypeStruct((B_pad, H), jnp.float32),
        ),
        grid=(B_pad // bb, n_chunks),
        in_specs=[
            pl.BlockSpec((St, bb, D), lambda i, t: (t, i, 0)),   # x chunk (time-major)
            pl.BlockSpec((D, 4 * H), lambda i, t: (0, 0)),       # w_ih (resident)
            pl.BlockSpec((H, 4 * H), lambda i, t: (0, 0)),       # w_hh (resident)
            pl.BlockSpec((H, A), lambda i, t: (0, 0)),           # w_fc (resident)
            pl.BlockSpec((1, 4 * H), lambda i, t: (0, 0)),       # b_ih + b_hh (resident)
            pl.BlockSpec((1, A), lambda i, t: (0, 0)),           # b_fc (resident)
            pl.BlockSpec((bb, H), lambda i, t: (i, 0)),          # h0
            pl.BlockSpec((bb, H), lambda i, t: (i, 0)),          # c0
        ],
        out_specs=(
            pl.BlockSpec((bb, A), lambda i, t: (i, 0)),
            pl.BlockSpec((bb, H), lambda i, t: (i, 0)),
            pl.BlockSpec((bb, H), lambda i, t: (i, 0)),
        ),
        scratch_shapes=[
            pltpu.VMEM((bb, H), jnp.float32),           # h carry
            pltpu.VMEM((bb, H), jnp.float32),           # c carry
            pltpu.VMEM((St, bb, 4 * H), jnp.float32),   # per-chunk input projection
        ],
        compiler_params=pltpu.CompilerParams(
            dimension_semantics=("parallel", "arbitrary"),
            vmem_limit_bytes=vmem_limit),
    )(x_tm, w_ih_bf, w_hh_bf, w_fc_bf, b_lstm, b_fc, h0, c0)

    if B_pad != B:
        q, h_n, c_n = q[:B], h_n[:B], c_n[:B]

    # PyTorch nn.LSTM returns (num_layers, batch, hidden) states.
    return q, (h_n[None, :, :], c_n[None, :, :])


def _reference_forward(x, params, hidden=None):
    """Pure-JAX f32 reference mirroring torch.nn.LSTM + Linear semantics."""
    B, S, D = x.shape
    H = params["w_hh"].shape[0]
    h = jnp.zeros((B, H), jnp.float32) if hidden is None else hidden[0].reshape(B, H)
    c = jnp.zeros((B, H), jnp.float32) if hidden is None else hidden[1].reshape(B, H)
    b = params["b_ih"] + params["b_hh"]
    for t in range(S):
        z = x[:, t, :] @ params["w_ih"] + h @ params["w_hh"] + b
        i = jax.nn.sigmoid(z[:, 0 * H:1 * H])
        f = jax.nn.sigmoid(z[:, 1 * H:2 * H])
        g = jnp.tanh(z[:, 2 * H:3 * H])
        o = jax.nn.sigmoid(z[:, 3 * H:4 * H])
        c = f * c + i * g
        h = o * jnp.tanh(c)
    q = h @ params["w_fc"] + params["b_fc"]
    return q, (h[None], c[None])


if __name__ == "__main__":
    # Small shapes consistent with the module: state_dim=4, action_dim=10, hidden=64.
    # batch=8 fills the 8-sublane vreg dimension; seq=8 -> single time chunk here,
    # but the kernel supports arbitrary S via the time-chunk grid axis.
    B, S, D, H, A = 8, 8, 4, 64, 10

    key = jax.random.PRNGKey(0)
    k_param, k_x = jax.random.split(key)
    params = init_lstm_dqn_params(k_param, state_dim=D, action_dim=A, hidden_size=H)
    x = jax.random.normal(k_x, (B, S, D), jnp.float32)

    q, (h_n, c_n) = lstm_dqn_forward(x, params, hidden=None)
    jax.block_until_ready((q, h_n, c_n))

    q_ref, (h_ref, c_ref) = _reference_forward(x, params, hidden=None)
    assert q.shape == (B, A) and h_n.shape == (1, B, H) and c_n.shape == (1, B, H)
    # Tolerance intentionally loosened vs. the f32-only version: the kernel feeds the
    # MXU bf16 inputs (per the perf review); all accumulation/elementwise math is f32.
    assert jnp.allclose(q, q_ref, atol=2e-2, rtol=2e-2)
    assert jnp.allclose(h_n, h_ref, atol=2e-2, rtol=2e-2)
    assert jnp.allclose(c_n, c_ref, atol=2e-2, rtol=2e-2)

    print("KERNEL_OK")
</pallas_src>

<mosaic_0001>
module attributes {stable_mosaic.version = 11 : i64} {
  func.func @lstm_dqn_kernel(%arg0: i32, %arg1: i32, %arg2: memref<8x8x4xf32, #tpu.memory_space<vmem>>, %arg3: memref<4x256xbf16, #tpu.memory_space<vmem>>, %arg4: memref<64x256xbf16, #tpu.memory_space<vmem>>, %arg5: memref<64x10xbf16, #tpu.memory_space<vmem>>, %arg6: memref<1x256xf32, #tpu.memory_space<vmem>>, %arg7: memref<1x10xf32, #tpu.memory_space<vmem>>, %arg8: memref<8x64xf32, #tpu.memory_space<vmem>>, %arg9: memref<8x64xf32, #tpu.memory_space<vmem>>, %arg10: memref<8x10xf32, #tpu.memory_space<vmem>>, %arg11: memref<8x64xf32, #tpu.memory_space<vmem>>, %arg12: memref<8x64xf32, #tpu.memory_space<vmem>>, %arg13: memref<8x64xf32, #tpu.memory_space<vmem>>, %arg14: memref<8x64xf32, #tpu.memory_space<vmem>>, %arg15: memref<8x8x256xf32, #tpu.memory_space<vmem>>) attributes {dimension_semantics = [#tpu.dimension_semantics<parallel>, #tpu.dimension_semantics<arbitrary>], iteration_bounds = array<i64: 1, 1>, scalar_prefetch = 0 : i64, scratch_operands = 3 : i64, tpu.core_type = #tpu.core_type<tc>, window_params = [{transform_indices = @transform_0, window_bounds = array<i64: 8, 8, 4>}, {pipeline_mode = #tpu.pipeline_mode<synchronous>, transform_indices = @transform_1, window_bounds = array<i64: 4, 256>}, {pipeline_mode = #tpu.pipeline_mode<synchronous>, transform_indices = @transform_2, window_bounds = array<i64: 64, 256>}, {pipeline_mode = #tpu.pipeline_mode<synchronous>, transform_indices = @transform_3, window_bounds = array<i64: 64, 10>}, {pipeline_mode = #tpu.pipeline_mode<synchronous>, transform_indices = @transform_4, window_bounds = array<i64: 1, 256>}, {pipeline_mode = #tpu.pipeline_mode<synchronous>, transform_indices = @transform_5, window_bounds = array<i64: 1, 10>}, {transform_indices = @transform_6, window_bounds = array<i64: 8, 64>}, {transform_indices = @transform_7, window_bounds = array<i64: 8, 64>}, {transform_indices = @transform_8, window_bounds = array<i64: 8, 10>}, {transform_indices = @transform_9, window_bounds = array<i64: 8, 64>}, {transform_indices = @transform_10, window_bounds = array<i64: 8, 64>}]} {
    %c0_i32 = arith.constant 0 : i32
    %0 = arith.cmpi eq, %arg1, %c0_i32 : i32
    %1 = arith.extui %0 : i1 to i32
    %c0_i32_0 = arith.constant 0 : i32
    %2 = arith.cmpi ne, %1, %c0_i32_0 : i32
    scf.if %2 {
      %c0_55 = arith.constant 0 : index
      %c0_56 = arith.constant 0 : index
      %197 = vector.load %arg8[%c0_55, %c0_56] : memref<8x64xf32, #tpu.memory_space<vmem>>, vector<8x64xf32>
      %c0_57 = arith.constant 0 : index
      %c0_58 = arith.constant 0 : index
      %198 = vector.load %arg13[%c0_57, %c0_58] : memref<8x64xf32, #tpu.memory_space<vmem>>, vector<8x64xf32>
      tpu.vector_store %arg13[%c0_57, %c0_58], %197 {strides = array<i32>} : memref<8x64xf32, #tpu.memory_space<vmem>>, vector<8x64xf32>,
      %c0_59 = arith.constant 0 : index
      %c0_60 = arith.constant 0 : index
      %199 = vector.load %arg9[%c0_59, %c0_60] : memref<8x64xf32, #tpu.memory_space<vmem>>, vector<8x64xf32>
      %c0_61 = arith.constant 0 : index
      %c0_62 = arith.constant 0 : index
      %200 = vector.load %arg14[%c0_61, %c0_62] : memref<8x64xf32, #tpu.memory_space<vmem>>, vector<8x64xf32>
      tpu.vector_store %arg14[%c0_61, %c0_62], %199 {strides = array<i32>} : memref<8x64xf32, #tpu.memory_space<vmem>>, vector<8x64xf32>,
    } else {
    }
    %c0 = arith.constant 0 : index
    %c0_1 = arith.constant 0 : index
    %c0_2 = arith.constant 0 : index
    %3 = vector.load %arg2[%c0, %c0_1, %c0_2] : memref<8x8x4xf32, #tpu.memory_space<vmem>>, vector<8x8x4xf32>
    %4 = vector.shape_cast %3 : vector<8x8x4xf32> to vector<64x4xf32>
    %5 = arith.truncf %4 : vector<64x4xf32> to vector<64x4xbf16>
    %c0_3 = arith.constant 0 : index
    %c0_4 = arith.constant 0 : index
    %6 = vector.load %arg3[%c0_3, %c0_4] : memref<4x256xbf16, #tpu.memory_space<vmem>>, vector<4x256xbf16>
    %cst = arith.constant dense<0.000000e+00> : vector<64x256xf32>
    %7 = tpu.matmul %5, %6, %cst {dimension_numbers = #tpu.dot_dimension_numbers<[1], [0], [0], [1], [0, 0, 1, 1], [], []>} : vector<64x4xbf16>, vector<4x256xbf16>, vector<64x256xf32> -> vector<64x256xf32>
    %c0_5 = arith.constant 0 : index
    %c0_6 = arith.constant 0 : index
    %8 = vector.load %arg6[%c0_5, %c0_6] : memref<1x256xf32, #tpu.memory_space<vmem>>, vector<1x256xf32>
    %9 = vector.broadcast %8 : vector<1x256xf32> to vector<64x256xf32>
    %10 = arith.addf %7, %9 : vector<64x256xf32>
    %11 = vector.shape_cast %10 : vector<64x256xf32> to vector<8x8x256xf32>
    %c0_7 = arith.constant 0 : index
    %c0_8 = arith.constant 0 : index
    %c0_9 = arith.constant 0 : index
    %12 = vector.load %arg15[%c0_7, %c0_8, %c0_9] : memref<8x8x256xf32, #tpu.memory_space<vmem>>, vector<8x8x256xf32>
    tpu.vector_store %arg15[%c0_7, %c0_8, %c0_9], %11 {strides = array<i32>} : memref<8x8x256xf32, #tpu.memory_space<vmem>>, vector<8x8x256xf32>,
    %c0_10 = arith.constant 0 : index
    %c0_11 = arith.constant 0 : index
    %13 = vector.load %arg4[%c0_10, %c0_11] : memref<64x256xbf16, #tpu.memory_space<vmem>>, vector<64x256xbf16>
    %c0_12 = arith.constant 0 : index
    %c0_13 = arith.constant 0 : index
    %14 = vector.load %arg13[%c0_12, %c0_13] : memref<8x64xf32, #tpu.memory_space<vmem>>, vector<8x64xf32>
    %c0_14 = arith.constant 0 : index
    %c0_15 = arith.constant 0 : index
    %15 = vector.load %arg14[%c0_14, %c0_15] : memref<8x64xf32, #tpu.memory_space<vmem>>, vector<8x64xf32>
    %c0_i32_16 = arith.constant 0 : i32
    %16 = arith.index_cast %c0_i32_16 : i32 to index
    %c0_17 = arith.constant 0 : index
    %c0_18 = arith.constant 0 : index
    %17 = vector.load %arg15[%16, %c0_17, %c0_18] : memref<8x8x256xf32, #tpu.memory_space<vmem>>, vector<1x8x256xf32>
    %18 = vector.shape_cast %17 : vector<1x8x256xf32> to vector<8x256xf32>
    %19 = arith.truncf %14 : vector<8x64xf32> to vector<8x64xbf16>
    %cst_19 = arith.constant dense<0.000000e+00> : vector<8x256xf32>
    %20 = tpu.matmul %19, %13, %cst_19 {dimension_numbers = #tpu.dot_dimension_numbers<[1], [0], [0], [1], [0, 0, 1, 1], [], []>} : vector<8x64xbf16>, vector<64x256xbf16>, vector<8x256xf32> -> vector<8x256xf32>
    %21 = arith.addf %18, %20 : vector<8x256xf32>
    %22 = arith.negf %21 : vector<8x256xf32>
    %23 = math.exp %22 : vector<8x256xf32>
    %cst_20 = arith.constant 1.000000e+00 : f32
    %24 = vector.broadcast %cst_20 : f32 to vector<8x256xf32>
    %25 = arith.addf %24, %23 : vector<8x256xf32>
    %26 = arith.divf %24, %25 : vector<8x256xf32>
    %27 = vector.extract_strided_slice %21 {offsets = [0, 128], sizes = [8, 128], strides = [1, 1]} : vector<8x256xf32> to vector<8x128xf32>
    %28 = math.tanh %27 : vector<8x128xf32>
    %29 = vector.extract_strided_slice %26 {offsets = [0, 0], sizes = [8, 64], strides = [1, 1]} : vector<8x256xf32> to vector<8x64xf32>
    %30 = vector.extract_strided_slice %26 {offsets = [0, 64], sizes = [8, 64], strides = [1, 1]} : vector<8x256xf32> to vector<8x64xf32>
    %31 = vector.extract_strided_slice %28 {offsets = [0, 0], sizes = [8, 64], strides = [1, 1]} : vector<8x128xf32> to vector<8x64xf32>
    %32 = vector.extract_strided_slice %26 {offsets = [0, 192], sizes = [8, 64], strides = [1, 1]} : vector<8x256xf32> to vector<8x64xf32>
    %33 = arith.mulf %30, %15 : vector<8x64xf32>
    %34 = arith.mulf %29, %31 : vector<8x64xf32>
    %35 = arith.addf %33, %34 : vector<8x64xf32>
    %36 = math.tanh %35 : vector<8x64xf32>
    %37 = arith.mulf %32, %36 : vector<8x64xf32>
    %c1_i32 = arith.constant 1 : i32
    %38 = arith.index_cast %c1_i32 : i32 to index
    %c0_21 = arith.constant 0 : index
    %c0_22 = arith.constant 0 : index
    %39 = vector.load %arg15[%38, %c0_21, %c0_22] : memref<8x8x256xf32, #tpu.memory_space<vmem>>, vector<1x8x256xf32>
    %40 = vector.shape_cast %39 : vector<1x8x256xf32> to vector<8x256xf32>
    %41 = arith.truncf %37 : vector<8x64xf32> to vector<8x64xbf16>
    %cst_23 = arith.constant dense<0.000000e+00> : vector<8x256xf32>
    %42 = tpu.matmul %41, %13, %cst_23 {dimension_numbers = #tpu.dot_dimension_numbers<[1], [0], [0], [1], [0, 0, 1, 1], [], []>} : vector<8x64xbf16>, vector<64x256xbf16>, vector<8x256xf32> -> vector<8x256xf32>
    %43 = arith.addf %40, %42 : vector<8x256xf32>
    %44 = arith.negf %43 : vector<8x256xf32>
    %45 = math.exp %44 : vector<8x256xf32>
    %cst_24 = arith.constant 1.000000e+00 : f32
    %46 = vector.broadcast %cst_24 : f32 to vector<8x256xf32>
    %47 = arith.addf %46, %45 : vector<8x256xf32>
    %48 = arith.divf %46, %47 : vector<8x256xf32>
    %49 = vector.extract_strided_slice %43 {offsets = [0, 128], sizes = [8, 128], strides = [1, 1]} : vector<8x256xf32> to vector<8x128xf32>
    %50 = math.tanh %49 : vector<8x128xf32>
    %51 = vector.extract_strided_slice %48 {offsets = [0, 0], sizes = [8, 64], strides = [1, 1]} : vector<8x256xf32> to vector<8x64xf32>
    %52 = vector.extract_strided_slice %48 {offsets = [0, 64], sizes = [8, 64], strides = [1, 1]} : vector<8x256xf32> to vector<8x64xf32>
    %53 = vector.extract_strided_slice %50 {offsets = [0, 0], sizes = [8, 64], strides = [1, 1]} : vector<8x128xf32> to vector<8x64xf32>
    %54 = vector.extract_strided_slice %48 {offsets = [0, 192], sizes = [8, 64], strides = [1, 1]} : vector<8x256xf32> to vector<8x64xf32>
    %55 = arith.mulf %52, %35 : vector<8x64xf32>
    %56 = arith.mulf %51, %53 : vector<8x64xf32>
    %57 = arith.addf %55, %56 : vector<8x64xf32>
    %58 = math.tanh %57 : vector<8x64xf32>
    %59 = arith.mulf %54, %58 : vector<8x64xf32>
    %c2_i32 = arith.constant 2 : i32
    %60 = arith.index_cast %c2_i32 : i32 to index
    %c0_25 = arith.constant 0 : index
    %c0_26 = arith.constant 0 : index
    %61 = vector.load %arg15[%60, %c0_25, %c0_26] : memref<8x8x256xf32, #tpu.memory_space<vmem>>, vector<1x8x256xf32>
    %62 = vector.shape_cast %61 : vector<1x8x256xf32> to vector<8x256xf32>
    %63 = arith.truncf %59 : vector<8x64xf32> to vector<8x64xbf16>
    %cst_27 = arith.constant dense<0.000000e+00> : vector<8x256xf32>
    %64 = tpu.matmul %63, %13, %cst_27 {dimension_numbers = #tpu.dot_dimension_numbers<[1], [0], [0], [1], [0, 0, 1, 1], [], []>} : vector<8x64xbf16>, vector<64x256xbf16>, vector<8x256xf32> -> vector<8x256xf32>
    %65 = arith.addf %62, %64 : vector<8x256xf32>
    %66 = arith.negf %65 : vector<8x256xf32>
    %67 = math.exp %66 : vector<8x256xf32>
    %cst_28 = arith.constant 1.000000e+00 : f32
    %68 = vector.broadcast %cst_28 : f32 to vector<8x256xf32>
    %69 = arith.addf %68, %67 : vector<8x256xf32>
    %70 = arith.divf %68, %69 : vector<8x256xf32>
    %71 = vector.extract_strided_slice %65 {offsets = [0, 128], sizes = [8, 128], strides = [1, 1]} : vector<8x256xf32> to vector<8x128xf32>
    %72 = math.tanh %71 : vector<8x128xf32>
    %73 = vector.extract_strided_slice %70 {offsets = [0, 0], sizes = [8, 64], strides = [1, 1]} : vector<8x256xf32> to vector<8x64xf32>
    %74 = vector.extract_strided_slice %70 {offsets = [0, 64], sizes = [8, 64], strides = [1, 1]} : vector<8x256xf32> to vector<8x64xf32>
    %75 = vector.extract_strided_slice %72 {offsets = [0, 0], sizes = [8, 64], strides = [1, 1]} : vector<8x128xf32> to vector<8x64xf32>
    %76 = vector.extract_strided_slice %70 {offsets = [0, 192], sizes = [8, 64], strides = [1, 1]} : vector<8x256xf32> to vector<8x64xf32>
    %77 = arith.mulf %74, %57 : vector<8x64xf32>
    %78 = arith.mulf %73, %75 : vector<8x64xf32>
    %79 = arith.addf %77, %78 : vector<8x64xf32>
    %80 = math.tanh %79 : vector<8x64xf32>
    %81 = arith.mulf %76, %80 : vector<8x64xf32>
    %c3_i32 = arith.constant 3 : i32
    %82 = arith.index_cast %c3_i32 : i32 to index
    %c0_29 = arith.constant 0 : index
    %c0_30 = arith.constant 0 : index
    %83 = vector.load %arg15[%82, %c0_29, %c0_30] : memref<8x8x256xf32, #tpu.memory_space<vmem>>, vector<1x8x256xf32>
    %84 = vector.shape_cast %83 : vector<1x8x256xf32> to vector<8x256xf32>
    %85 = arith.truncf %81 : vector<8x64xf32> to vector<8x64xbf16>
    %cst_31 = arith.constant dense<0.000000e+00> : vector<8x256xf32>
    %86 = tpu.matmul %85, %13, %cst_31 {dimension_numbers = #tpu.dot_dimension_numbers<[1], [0], [0], [1], [0, 0, 1, 1], [], []>} : vector<8x64xbf16>, vector<64x256xbf16>, vector<8x256xf32> -> vector<8x256xf32>
    %87 = arith.addf %84, %86 : vector<8x256xf32>
    %88 = arith.negf %87 : vector<8x256xf32>
    %89 = math.exp %88 : vector<8x256xf32>
    %cst_32 = arith.constant 1.000000e+00 : f32
    %90 = vector.broadcast %cst_32 : f32 to vector<8x256xf32>
    %91 = arith.addf %90, %89 : vector<8x256xf32>
    %92 = arith.divf %90, %91 : vector<8x256xf32>
    %93 = vector.extract_strided_slice %87 {offsets = [0, 128], sizes = [8, 128], strides = [1, 1]} : vector<8x256xf32> to vector<8x128xf32>
    %94 = math.tanh %93 : vector<8x128xf32>
    %95 = vector.extract_strided_slice %92 {offsets = [0, 0], sizes = [8, 64], strides = [1, 1]} : vector<8x256xf32> to vector<8x64xf32>
    %96 = vector.extract_strided_slice %92 {offsets = [0, 64], sizes = [8, 64], strides = [1, 1]} : vector<8x256xf32> to vector<8x64xf32>
    %97 = vector.extract_strided_slice %94 {offsets = [0, 0], sizes = [8, 64], strides = [1, 1]} : vector<8x128xf32> to vector<8x64xf32>
    %98 = vector.extract_strided_slice %92 {offsets = [0, 192], sizes = [8, 64], strides = [1, 1]} : vector<8x256xf32> to vector<8x64xf32>
    %99 = arith.mulf %96, %79 : vector<8x64xf32>
    %100 = arith.mulf %95, %97 : vector<8x64xf32>
    %101 = arith.addf %99, %100 : vector<8x64xf32>
    %102 = math.tanh %101 : vector<8x64xf32>
    %103 = arith.mulf %98, %102 : vector<8x64xf32>
    %c4_i32 = arith.constant 4 : i32
    %104 = arith.index_cast %c4_i32 : i32 to index
    %c0_33 = arith.constant 0 : index
    %c0_34 = arith.constant 0 : index
    %105 = vector.load %arg15[%104, %c0_33, %c0_34] : memref<8x8x256xf32, #tpu.memory_space<vmem>>, vector<1x8x256xf32>
    %106 = vector.shape_cast %105 : vector<1x8x256xf32> to vector<8x256xf32>
    %107 = arith.truncf %103 : vector<8x64xf32> to vector<8x64xbf16>
    %cst_35 = arith.constant dense<0.000000e+00> : vector<8x256xf32>
    %108 = tpu.matmul %107, %13, %cst_35 {dimension_numbers = #tpu.dot_dimension_numbers<[1], [0], [0], [1], [0, 0, 1, 1], [], []>} : vector<8x64xbf16>, vector<64x256xbf16>, vector<8x256xf32> -> vector<8x256xf32>
    %109 = arith.addf %106, %108 : vector<8x256xf32>
    %110 = arith.negf %109 : vector<8x256xf32>
    %111 = math.exp %110 : vector<8x256xf32>
    %cst_36 = arith.constant 1.000000e+00 : f32
    %112 = vector.broadcast %cst_36 : f32 to vector<8x256xf32>
    %113 = arith.addf %112, %111 : vector<8x256xf32>
    %114 = arith.divf %112, %113 : vector<8x256xf32>
    %115 = vector.extract_strided_slice %109 {offsets = [0, 128], sizes = [8, 128], strides = [1, 1]} : vector<8x256xf32> to vector<8x128xf32>
    %116 = math.tanh %115 : vector<8x128xf32>
    %117 = vector.extract_strided_slice %114 {offsets = [0, 0], sizes = [8, 64], strides = [1, 1]} : vector<8x256xf32> to vector<8x64xf32>
    %118 = vector.extract_strided_slice %114 {offsets = [0, 64], sizes = [8, 64], strides = [1, 1]} : vector<8x256xf32> to vector<8x64xf32>
    %119 = vector.extract_strided_slice %116 {offsets = [0, 0], sizes = [8, 64], strides = [1, 1]} : vector<8x128xf32> to vector<8x64xf32>
    %120 = vector.extract_strided_slice %114 {offsets = [0, 192], sizes = [8, 64], strides = [1, 1]} : vector<8x256xf32> to vector<8x64xf32>
    %121 = arith.mulf %118, %101 : vector<8x64xf32>
    %122 = arith.mulf %117, %119 : vector<8x64xf32>
    %123 = arith.addf %121, %122 : vector<8x64xf32>
    %124 = math.tanh %123 : vector<8x64xf32>
    %125 = arith.mulf %120, %124 : vector<8x64xf32>
    %c5_i32 = arith.constant 5 : i32
    %126 = arith.index_cast %c5_i32 : i32 to index
    %c0_37 = arith.constant 0 : index
    %c0_38 = arith.constant 0 : index
    %127 = vector.load %arg15[%126, %c0_37, %c0_38] : memref<8x8x256xf32, #tpu.memory_space<vmem>>, vector<1x8x256xf32>
    %128 = vector.shape_cast %127 : vector<1x8x256xf32> to vector<8x256xf32>
    %129 = arith.truncf %125 : vector<8x64xf32> to vector<8x64xbf16>
    %cst_39 = arith.constant dense<0.000000e+00> : vector<8x256xf32>
    %130 = tpu.matmul %129, %13, %cst_39 {dimension_numbers = #tpu.dot_dimension_numbers<[1], [0], [0], [1], [0, 0, 1, 1], [], []>} : vector<8x64xbf16>, vector<64x256xbf16>, vector<8x256xf32> -> vector<8x256xf32>
    %131 = arith.addf %128, %130 : vector<8x256xf32>
    %132 = arith.negf %131 : vector<8x256xf32>
    %133 = math.exp %132 : vector<8x256xf32>
    %cst_40 = arith.constant 1.000000e+00 : f32
    %134 = vector.broadcast %cst_40 : f32 to vector<8x256xf32>
    %135 = arith.addf %134, %133 : vector<8x256xf32>
    %136 = arith.divf %134, %135 : vector<8x256xf32>
    %137 = vector.extract_strided_slice %131 {offsets = [0, 128], sizes = [8, 128], strides = [1, 1]} : vector<8x256xf32> to vector<8x128xf32>
    %138 = math.tanh %137 : vector<8x128xf32>
    %139 = vector.extract_strided_slice %136 {offsets = [0, 0], sizes = [8, 64], strides = [1, 1]} : vector<8x256xf32> to vector<8x64xf32>
    %140 = vector.extract_strided_slice %136 {offsets = [0, 64], sizes = [8, 64], strides = [1, 1]} : vector<8x256xf32> to vector<8x64xf32>
    %141 = vector.extract_strided_slice %138 {offsets = [0, 0], sizes = [8, 64], strides = [1, 1]} : vector<8x128xf32> to vector<8x64xf32>
    %142 = vector.extract_strided_slice %136 {offsets = [0, 192], sizes = [8, 64], strides = [1, 1]} : vector<8x256xf32> to vector<8x64xf32>
    %143 = arith.mulf %140, %123 : vector<8x64xf32>
    %144 = arith.mulf %139, %141 : vector<8x64xf32>
    %145 = arith.addf %143, %144 : vector<8x64xf32>
    %146 = math.tanh %145 : vector<8x64xf32>
    %147 = arith.mulf %142, %146 : vector<8x64xf32>
    %c6_i32 = arith.constant 6 : i32
    %148 = arith.index_cast %c6_i32 : i32 to index
    %c0_41 = arith.constant 0 : index
    %c0_42 = arith.constant 0 : index
    %149 = vector.load %arg15[%148, %c0_41, %c0_42] : memref<8x8x256xf32, #tpu.memory_space<vmem>>, vector<1x8x256xf32>
    %150 = vector.shape_cast %149 : vector<1x8x256xf32> to vector<8x256xf32>
    %151 = arith.truncf %147 : vector<8x64xf32> to vector<8x64xbf16>
    %cst_43 = arith.constant dense<0.000000e+00> : vector<8x256xf32>
    %152 = tpu.matmul %151, %13, %cst_43 {dimension_numbers = #tpu.dot_dimension_numbers<[1], [0], [0], [1], [0, 0, 1, 1], [], []>} : vector<8x64xbf16>, vector<64x256xbf16>, vector<8x256xf32> -> vector<8x256xf32>
    %153 = arith.addf %150, %152 : vector<8x256xf32>
    %154 = arith.negf %153 : vector<8x256xf32>
    %155 = math.exp %154 : vector<8x256xf32>
    %cst_44 = arith.constant 1.000000e+00 : f32
    %156 = vector.broadcast %cst_44 : f32 to vector<8x256xf32>
    %157 = arith.addf %156, %155 : vector<8x256xf32>
    %158 = arith.divf %156, %157 : vector<8x256xf32>
    %159 = vector.extract_strided_slice %153 {offsets = [0, 128], sizes = [8, 128], strides = [1, 1]} : vector<8x256xf32> to vector<8x128xf32>
    %160 = math.tanh %159 : vector<8x128xf32>
    %161 = vector.extract_strided_slice %158 {offsets = [0, 0], sizes = [8, 64], strides = [1, 1]} : vector<8x256xf32> to vector<8x64xf32>
    %162 = vector.extract_strided_slice %158 {offsets = [0, 64], sizes = [8, 64], strides = [1, 1]} : vector<8x256xf32> to vector<8x64xf32>
    %163 = vector.extract_strided_slice %160 {offsets = [0, 0], sizes = [8, 64], strides = [1, 1]} : vector<8x128xf32> to vector<8x64xf32>
    %164 = vector.extract_strided_slice %158 {offsets = [0, 192], sizes = [8, 64], strides = [1, 1]} : vector<8x256xf32> to vector<8x64xf32>
    %165 = arith.mulf %162, %145 : vector<8x64xf32>
    %166 = arith.mulf %161, %163 : vector<8x64xf32>
    %167 = arith.addf %165, %166 : vector<8x64xf32>
    %168 = math.tanh %167 : vector<8x64xf32>
    %169 = arith.mulf %164, %168 : vector<8x64xf32>
    %c7_i32 = arith.constant 7 : i32
    %170 = arith.index_cast %c7_i32 : i32 to index
    %c0_45 = arith.constant 0 : index
    %c0_46 = arith.constant 0 : index
    %171 = vector.load %arg15[%170, %c0_45, %c0_46] : memref<8x8x256xf32, #tpu.memory_space<vmem>>, vector<1x8x256xf32>
    %172 = vector.shape_cast %171 : vector<1x8x256xf32> to vector<8x256xf32>
    %173 = arith.truncf %169 : vector<8x64xf32> to vector<8x64xbf16>
    %cst_47 = arith.constant dense<0.000000e+00> : vector<8x256xf32>
    %174 = tpu.matmul %173, %13, %cst_47 {dimension_numbers = #tpu.dot_dimension_numbers<[1], [0], [0], [1], [0, 0, 1, 1], [], []>} : vector<8x64xbf16>, vector<64x256xbf16>, vector<8x256xf32> -> vector<8x256xf32>
    %175 = arith.addf %172, %174 : vector<8x256xf32>
    %176 = arith.negf %175 : vector<8x256xf32>
    %177 = math.exp %176 : vector<8x256xf32>
    %cst_48 = arith.constant 1.000000e+00 : f32
    %178 = vector.broadcast %cst_48 : f32 to vector<8x256xf32>
    %179 = arith.addf %178, %177 : vector<8x256xf32>
    %180 = arith.divf %178, %179 : vector<8x256xf32>
    %181 = vector.extract_strided_slice %175 {offsets = [0, 128], sizes = [8, 128], strides = [1, 1]} : vector<8x256xf32> to vector<8x128xf32>
    %182 = math.tanh %181 : vector<8x128xf32>
    %183 = vector.extract_strided_slice %180 {offsets = [0, 0], sizes = [8, 64], strides = [1, 1]} : vector<8x256xf32> to vector<8x64xf32>
    %184 = vector.extract_strided_slice %180 {offsets = [0, 64], sizes = [8, 64], strides = [1, 1]} : vector<8x256xf32> to vector<8x64xf32>
    %185 = vector.extract_strided_slice %182 {offsets = [0, 0], sizes = [8, 64], strides = [1, 1]} : vector<8x128xf32> to vector<8x64xf32>
    %186 = vector.extract_strided_slice %180 {offsets = [0, 192], sizes = [8, 64], strides = [1, 1]} : vector<8x256xf32> to vector<8x64xf32>
    %187 = arith.mulf %184, %167 : vector<8x64xf32>
    %188 = arith.mulf %183, %185 : vector<8x64xf32>
    %189 = arith.addf %187, %188 : vector<8x64xf32>
    %190 = math.tanh %189 : vector<8x64xf32>
    %191 = arith.mulf %186, %190 : vector<8x64xf32>
    %c8_i32 = arith.constant 8 : i32
    %c0_49 = arith.constant 0 : index
    %c0_50 = arith.constant 0 : index
    %192 = vector.load %arg13[%c0_49, %c0_50] : memref<8x64xf32, #tpu.memory_space<vmem>>, vector<8x64xf32>
    tpu.vector_store %arg13[%c0_49, %c0_50], %191 {strides = array<i32>} : memref<8x64xf32, #tpu.memory_space<vmem>>, vector<8x64xf32>,
    %c0_51 = arith.constant 0 : index
    %c0_52 = arith.constant 0 : index
    %193 = vector.load %arg14[%c0_51, %c0_52] : memref<8x64xf32, #tpu.memory_space<vmem>>, vector<8x64xf32>
    tpu.vector_store %arg14[%c0_51, %c0_52], %189 {strides = array<i32>} : memref<8x64xf32, #tpu.memory_space<vmem>>, vector<8x64xf32>,
    %c0_i32_53 = arith.constant 0 : i32
    %194 = arith.cmpi eq, %arg1, %c0_i32_53 : i32
    %195 = arith.extui %194 : i1 to i32
    %c0_i32_54 = arith.constant 0 : i32
    %196 = arith.cmpi ne, %195, %c0_i32_54 : i32
    scf.if %196 {
      %197 = arith.truncf %191 : vector<8x64xf32> to vector<8x64xbf16>
      %c0_55 = arith.constant 0 : index
      %c0_56 = arith.constant 0 : index
      %198 = vector.load %arg5[%c0_55, %c0_56] : memref<64x10xbf16, #tpu.memory_space<vmem>>, vector<64x10xbf16>
      %cst_57 = arith.constant dense<0.000000e+00> : vector<8x10xf32>
      %199 = tpu.matmul %197, %198, %cst_57 {dimension_numbers = #tpu.dot_dimension_numbers<[1], [0], [0], [1], [0, 0, 1, 1], [], []>} : vector<8x64xbf16>, vector<64x10xbf16>, vector<8x10xf32> -> vector<8x10xf32>
      %c0_58 = arith.constant 0 : index
      %c0_59 = arith.constant 0 : index
      %200 = vector.load %arg7[%c0_58, %c0_59] : memref<1x10xf32, #tpu.memory_space<vmem>>, vector<1x10xf32>
      %201 = vector.broadcast %200 : vector<1x10xf32> to vector<8x10xf32>
      %202 = arith.addf %199, %201 : vector<8x10xf32>
      %c0_60 = arith.constant 0 : index
      %c0_61 = arith.constant 0 : index
      %203 = vector.load %arg10[%c0_60, %c0_61] : memref<8x10xf32, #tpu.memory_space<vmem>>, vector<8x10xf32>
      tpu.vector_store %arg10[%c0_60, %c0_61], %202 {strides = array<i32>} : memref<8x10xf32, #tpu.memory_space<vmem>>, vector<8x10xf32>,
      %c0_62 = arith.constant 0 : index
      %c0_63 = arith.constant 0 : index
      %204 = vector.load %arg11[%c0_62, %c0_63] : memref<8x64xf32, #tpu.memory_space<vmem>>, vector<8x64xf32>
      tpu.vector_store %arg11[%c0_62, %c0_63], %191 {strides = array<i32>} : memref<8x64xf32, #tpu.memory_space<vmem>>, vector<8x64xf32>,
      %c0_64 = arith.constant 0 : index
      %c0_65 = arith.constant 0 : index
      %205 = vector.load %arg12[%c0_64, %c0_65] : memref<8x64xf32, #tpu.memory_space<vmem>>, vector<8x64xf32>
      tpu.vector_store %arg12[%c0_64, %c0_65], %189 {strides = array<i32>} : memref<8x64xf32, #tpu.memory_space<vmem>>, vector<8x64xf32>,
    } else {
    }
    return
  }
  func.func @transform_0(%arg0: i32, %arg1: i32) -> (i32, i32, i32) {
    %c0_i32 = arith.constant 0 : i32
    %c0_i32_0 = arith.constant 0 : i32
    return %arg1, %arg0, %c0_i32 : i32, i32, i32
  }
  func.func @transform_1(%arg0: i32, %arg1: i32) -> (i32, i32) {
    %c0_i32 = arith.constant 0 : i32
    %c0_i32_0 = arith.constant 0 : i32
    %c0_i32_1 = arith.constant 0 : i32
    return %c0_i32, %c0_i32_0 : i32, i32
  }
  func.func @transform_2(%arg0: i32, %arg1: i32) -> (i32, i32) {
    %c0_i32 = arith.constant 0 : i32
    %c0_i32_0 = arith.constant 0 : i32
    %c0_i32_1 = arith.constant 0 : i32
    return %c0_i32, %c0_i32_0 : i32, i32
  }
  func.func @transform_3(%arg0: i32, %arg1: i32) -> (i32, i32) {
    %c0_i32 = arith.constant 0 : i32
    %c0_i32_0 = arith.constant 0 : i32
    %c0_i32_1 = arith.constant 0 : i32
    return %c0_i32, %c0_i32_0 : i32, i32
  }
  func.func @transform_4(%arg0: i32, %arg1: i32) -> (i32, i32) {
    %c0_i32 = arith.constant 0 : i32
    %c0_i32_0 = arith.constant 0 : i32
    %c0_i32_1 = arith.constant 0 : i32
    return %c0_i32, %c0_i32_0 : i32, i32
  }
  func.func @transform_5(%arg0: i32, %arg1: i32) -> (i32, i32) {
    %c0_i32 = arith.constant 0 : i32
    %c0_i32_0 = arith.constant 0 : i32
    %c0_i32_1 = arith.constant 0 : i32
    return %c0_i32, %c0_i32_0 : i32, i32
  }
  func.func @transform_6(%arg0: i32, %arg1: i32) -> (i32, i32) {
    %c0_i32 = arith.constant 0 : i32
    %c0_i32_0 = arith.constant 0 : i32
    return %arg0, %c0_i32 : i32, i32
  }
  func.func @transform_7(%arg0: i32, %arg1: i32) -> (i32, i32) {
    %c0_i32 = arith.constant 0 : i32
    %c0_i32_0 = arith.constant 0 : i32
    return %arg0, %c0_i32 : i32, i32
  }
  func.func @transform_8(%arg0: i32, %arg1: i32) -> (i32, i32) {
    %c0_i32 = arith.constant 0 : i32
    %c0_i32_0 = arith.constant 0 : i32
    return %arg0, %c0_i32 : i32, i32
  }
  func.func @transform_9(%arg0: i32, %arg1: i32) -> (i32, i32) {
    %c0_i32 = arith.constant 0 : i32
    %c0_i32_0 = arith.constant 0 : i32
    return %arg0, %c0_i32 : i32, i32
  }
  func.func @transform_10(%arg0: i32, %arg1: i32) -> (i32, i32) {
    %c0_i32 = arith.constant 0 : i32
    %c0_i32_0 = arith.constant 0 : i32
    return %arg0, %c0_i32 : i32, i32
  }
}

</mosaic_0001>

<llo_original>
// kernel: tpu_custom_call.1
$region0: #{tpu_custom_call.1}
  #allocation0 [shape = 'u32[]', space=smem, size = 0x4, offset = 0x4, fixed_abs, tag = 'smem constant byte address 0x4 - core index']
  #allocation1 [shape = 'u32[72,128]{1,0:T(1,128)}', space=vmem, size = 0x9000, scoped, tag = 'internal scratch']
  #allocation2 [shape = 'f32[8,64]{1,0:T(8,128)}', space=vmem, size = 0x1000, scoped, tag = 'scratch operand']
  #allocation3 [shape = 'f32[8,64]{1,0:T(8,128)}', space=vmem, size = 0x1000, scoped, tag = 'scratch operand']
  #allocation4 [shape = 'f32[8,8,256]{2,1,0:T(8,128)}', space=vmem, size = 0x10000, scoped, tag = 'scratch operand']
  %s0 = inlined_call_operand.vmem [shape: f32[8,8,4], index: 0, kind: input, shape index: {}]
  %s1 = inlined_call_operand.vmem [shape: bf16[4,256], index: 1, kind: input, shape index: {}]
  %s2 = inlined_call_operand.vmem [shape: bf16[64,256], index: 2, kind: input, shape index: {}]
  %s3 = inlined_call_operand.vmem [shape: bf16[64,10], index: 3, kind: input, shape index: {}]
  %s4 = inlined_call_operand.vmem [shape: f32[1,256], index: 4, kind: input, shape index: {}]
  %s5 = inlined_call_operand.vmem [shape: f32[1,10], index: 5, kind: input, shape index: {}]
  %s6 = inlined_call_operand.vmem [shape: f32[8,64], index: 6, kind: input, shape index: {}]
  %s7 = inlined_call_operand.vmem [shape: f32[8,64], index: 7, kind: input, shape index: {}]
  %s8 = inlined_call_operand.hbm [shape: f32[8,10], index: 8, kind: output, shape index: {0}]
  %s9 = inlined_call_operand.hbm [shape: f32[8,64], index: 9, kind: output, shape index: {1}]
  %s10 = inlined_call_operand.hbm [shape: f32[8,64], index: 10, kind: output, shape index: {2}]
  %11 = xla_tuple %s8, %s9, %s10
  %s12 = sld [smem:[#allocation0]]
  $region66: #{tpu_custom_call.1} parent=0
    _
  %s14 = ssub.s32 1, %s12
  %s15 = scalar_select 0, %s14, %s12
  $region1: #{tpu_custom_call.1} parent=0
    #allocation5 [shape = 'u8[4096]{0}', space=vmem, size = 0x1000, scoped, tag = 'output window, operand 0, single buffered']
    #allocation6 [shape = 's32[1]{0}', space=sflag, size = 0x4, scoped, tag = 'scoped memory for tpu_custom_call.1']
    #allocation7 [shape = 'u8[4096]{0}', space=vmem, size = 0x1000, scoped, tag = 'output window, operand 1, single buffered']
    #allocation8 [shape = 's32[1]{0}', space=sflag, size = 0x4, scoped, tag = 'scoped memory for tpu_custom_call.1']
    #allocation9 [shape = 'u8[4096]{0}', space=vmem, size = 0x1000, scoped, tag = 'output window, operand 2, single buffered']
    %16 = vsyncpa [#allocation6], 0
    %17 = vsyncpa [#allocation8], 0
    // Predicated region
    $region2: #{tpu_custom_call.1} parent=1 // pred_check
      _
    $region3: #{tpu_custom_call.1} parent=1 // pred_check_branch
      %19 = sbr.rel (0) target = $region5
    $region4: #{tpu_custom_call.1} parent=1 // pred_region
      _
    $region5: #{tpu_custom_call.1} parent=1 // pred_fallthru
      _
    // Predicated region
    $region6: #{tpu_custom_call.1} parent=1 // pred_check
      _
    $region7: #{tpu_custom_call.1} parent=1 // pred_check_branch
      %21 = sbr.rel (0) target = $region9
    $region8: #{tpu_custom_call.1} parent=1 // pred_region
      _
    $region9: #{tpu_custom_call.1} parent=1 // pred_fallthru
      _
    // Predicated region
    $region10: #{tpu_custom_call.1} parent=1 // pred_check
      _
    $region11: #{tpu_custom_call.1} parent=1 // pred_check_branch
      %23 = sbr.rel (0) target = $region13
    $region12: #{tpu_custom_call.1} parent=1 // pred_region
      _
    $region13: #{tpu_custom_call.1} parent=1 // pred_fallthru
      _
    // Predicated region
    $region14: #{tpu_custom_call.1} parent=1 // pred_check
      _
    $region15: #{tpu_custom_call.1} parent=1 // pred_check_branch
      %25 = sbr.rel (0) target = $region17
    $region16: #{tpu_custom_call.1} parent=1 // pred_region
      _
    $region17: #{tpu_custom_call.1} parent=1 // pred_fallthru
      _
    // Predicated region
    $region18: #{tpu_custom_call.1} parent=1 // pred_check
      _
    $region19: #{tpu_custom_call.1} parent=1 // pred_check_branch
      %27 = sbr.rel (0) target = $region21
    $region20: #{tpu_custom_call.1} parent=1 // pred_region
      _
    $region21: #{tpu_custom_call.1} parent=1 // pred_fallthru
      _
    // Predicated region
    $region22: #{tpu_custom_call.1} parent=1 // pred_check
      _
    $region23: #{tpu_custom_call.1} parent=1 // pred_check_branch
      %29 = sbr.rel (0) target = $region25
    $region24: #{tpu_custom_call.1} parent=1 // pred_region
      _
    $region25: #{tpu_custom_call.1} parent=1 // pred_fallthru
      _
    // Predicated region
    $region26: #{tpu_custom_call.1} parent=1 // pred_check
      _
    $region27: #{tpu_custom_call.1} parent=1 // pred_check_branch
      %31 = sbr.rel (0) target = $region29
    $region28: #{tpu_custom_call.1} parent=1 // pred_region
      _
    $region29: #{tpu_custom_call.1} parent=1 // pred_fallthru
      _
    // Predicated region
    $region30: #{tpu_custom_call.1} parent=1 // pred_check
      _
    $region31: #{tpu_custom_call.1} parent=1 // pred_check_branch
      %33 = sbr.rel (0) target = $region33
    $region32: #{tpu_custom_call.1} parent=1 // pred_region
      _
    $region33: #{tpu_custom_call.1} parent=1 // pred_fallthru
      _
    %p35 = scmp.eq.s32.totalorder 0, 0
    // Predicated region
    $region34: #{tpu_custom_call.1} parent=1 // pred_check
      %p36 = pneg %p35
    $region35: #{tpu_custom_call.1} parent=1 // pred_check_branch
      %38 = sbr.rel (%p36) target = $region37
    $region36: #{tpu_custom_call.1} parent=1 // pred_region
      %v39 = vld [vmem:[%s6] sm:$0xff]
      %vm40 = vcmask 523264
      %41 = vst.msk [vmem:[#allocation2] sm:$0xff] %vm40, %v39
      %v42 = vld [vmem:[%s7] sm:$0xff]
      %43 = vst.msk [vmem:[#allocation3] sm:$0xff] %vm40, %v42
    $region37: #{tpu_custom_call.1} parent=1 // pred_fallthru
      _
    %v44 = vld [vmem:[%s0] sm:$0xff]
    %v45 = vld [vmem:[%s0 + $0x8] sm:$0xff]
    %v46 = vld [vmem:[%s0 + $0x10] sm:$0xff]
    %v47 = vld [vmem:[%s0 + $0x18] sm:$0xff]
    %v48 = vld [vmem:[%s0 + $0x20] sm:$0xff]
    %v49 = vld [vmem:[%s0 + $0x28] sm:$0xff]
    %v50 = vld [vmem:[%s0 + $0x30] sm:$0xff]
    %v51 = vld [vmem:[%s0 + $0x38] sm:$0xff]
    %v52 = vpack.c.bf16 %v45, %v44
    %v53 = vpack.c.bf16 %v47, %v46
    %v54 = vpack.c.bf16 %v49, %v48
    %v55 = vpack.c.bf16 %v51, %v50
    %v56 = vld [vmem:[%s1] sm:$0xf]
    %v57 = vld [vmem:[%s4] sm:$0x3]
    %v59 = vperm.slane %v57, 0
    %v60 = vperm.slane %v57, 1
    %64 = vst [vmem:[#allocation1] ss:$4 sm:$0xff] %v56
    %v65 = vld.sshfl [vmem:[#allocation1] sm:$0xff pattern:$0x73625140]
    %v66 = vld.sshfl [vmem:[#allocation1 + $0x8] sm:$0xff pattern:$0x73625140]
    %vm67 = vcmask 31744
    %v69 = vsel %vm67, %v52, 0
    %v72 = vsel %vm67, %v53, 0
    %v75 = vsel %vm67, %v54, 0
    %v78 = vsel %vm67, %v55, 0
    %vm80 = vcmask 1041408
    %v81 = vsel %vm80, %v65, 0
    %v83 = vsel %vm80, %v66, 0
    %85 = vmatpush.bf16.msra.mxu0 0
    %86 = vmatpush.bf16.msra.mxu0 0
    %87 = vmatpush.bf16.msra.mxu0 0
    %88 = vmatpush.bf16.msra.mxu0 0
    %89 = vmatpush.bf16.msra.mxu0 0
    %90 = vmatpush.bf16.msra.mxu0 0
    %91 = vmatpush.bf16.msra.mxu0 0
    %92 = vmatpush.bf16.msra.mxu0 %v81
    %93 = vmatmul.bf16.gmra.mxu0 %v69
    %v94 = vpop.f32.mrf.mxu0
    %v95 = vadd.f32 %v59, %v94
    %v96 = vpop.f32.mrf.mxu0
    %v97 = vadd.f32 %v59, %v96
    %98 = vmatmul.bf16.gmra.mxu0 %v72
    %v99 = vpop.f32.mrf.mxu0
    %v100 = vadd.f32 %v59, %v99
    %v101 = vpop.f32.mrf.mxu0
    %v102 = vadd.f32 %v59, %v101
    %103 = vmatmul.bf16.gmra.mxu0 %v75
    %v104 = vpop.f32.mrf.mxu0
    %v105 = vadd.f32 %v59, %v104
    %v106 = vpop.f32.mrf.mxu0
    %v107 = vadd.f32 %v59, %v106
    %108 = vmatmul.bf16.gmra.mxu0 %v78
    %v109 = vpop.f32.mrf.mxu0
    %v110 = vadd.f32 %v59, %v109
    %v111 = vpop.f32.mrf.mxu0
    %v112 = vadd.f32 %v59, %v111
    %113 = vdwg.mxu0
    %114 = vmatpush.bf16.msra.mxu0 0
    %115 = vmatpush.bf16.msra.mxu0 0
    %116 = vmatpush.bf16.msra.mxu0 0
    %117 = vmatpush.bf16.msra.mxu0 0
    %118 = vmatpush.bf16.msra.mxu0 0
    %119 = vmatpush.bf16.msra.mxu0 0
    %120 = vmatpush.bf16.msra.mxu0 0
    %121 = vmatpush.bf16.msra.mxu0 %v83
    %122 = vmatmul.bf16.gmra.mxu0 %v69
    %v123 = vpop.f32.mrf.mxu0
    %v124 = vadd.f32 %v60, %v123
    %v125 = vpop.f32.mrf.mxu0
    %v126 = vadd.f32 %v60, %v125
    %127 = vmatmul.bf16.gmra.mxu0 %v72
    %v128 = vpop.f32.mrf.mxu0
    %v129 = vadd.f32 %v60, %v128
    %v130 = vpop.f32.mrf.mxu0
    %v131 = vadd.f32 %v60, %v130
    %132 = vmatmul.bf16.gmra.mxu0 %v75
    %v133 = vpop.f32.mrf.mxu0
    %v134 = vadd.f32 %v60, %v133
    %v135 = vpop.f32.mrf.mxu0
    %v136 = vadd.f32 %v60, %v135
    %137 = vmatmul.bf16.gmra.mxu0 %v78
    %v138 = vpop.f32.mrf.mxu0
    %v139 = vadd.f32 %v60, %v138
    %v140 = vpop.f32.mrf.mxu0
    %v141 = vadd.f32 %v60, %v140
    %142 = vdwg.mxu0
    %143 = vst [vmem:[#allocation4] sm:$0xff] %v95
    %144 = vst [vmem:[#allocation4 + $0x8] sm:$0xff] %v124
    %145 = vst [vmem:[#allocation4 + $0x10] sm:$0xff] %v97
    %146 = vst [vmem:[#allocation4 + $0x18] sm:$0xff] %v126
    %147 = vst [vmem:[#allocation4 + $0x20] sm:$0xff] %v100
    %148 = vst [vmem:[#allocation4 + $0x28] sm:$0xff] %v129
    %149 = vst [vmem:[#allocation4 + $0x30] sm:$0xff] %v102
    %150 = vst [vmem:[#allocation4 + $0x38] sm:$0xff] %v131
    %151 = vst [vmem:[#allocation4 + $0x40] sm:$0xff] %v105
    %152 = vst [vmem:[#allocation4 + $0x48] sm:$0xff] %v134
    %153 = vst [vmem:[#allocation4 + $0x50] sm:$0xff] %v107
    %154 = vst [vmem:[#allocation4 + $0x58] sm:$0xff] %v136
    %155 = vst [vmem:[#allocation4 + $0x60] sm:$0xff] %v110
    %156 = vst [vmem:[#allocation4 + $0x68] sm:$0xff] %v139
    %157 = vst [vmem:[#allocation4 + $0x70] sm:$0xff] %v112
    %158 = vst [vmem:[#allocation4 + $0x78] sm:$0xff] %v141
    %v159 = vld [vmem:[%s2] sm:$0xff]
    %v160 = vld [vmem:[%s2 + $0x8] sm:$0xff]
    %v161 = vld [vmem:[%s2 + $0x10] sm:$0xff]
    %v162 = vld [vmem:[%s2 + $0x18] sm:$0xff]
    %v163 = vld [vmem:[%s2 + $0x20] sm:$0xff]
    %v164 = vld [vmem:[%s2 + $0x28] sm:$0xff]
    %v165 = vld [vmem:[%s2 + $0x30] sm:$0xff]
    %v166 = vld [vmem:[%s2 + $0x38] sm:$0xff]
    %v167 = vld [vmem:[#allocation2] sm:$0xff]
    %v168 = vld [vmem:[#allocation3] sm:$0xff]
    %v169 = vld [vmem:[#allocation4] sm:$0xff]
    %v170 = vld [vmem:[#allocation4 + $0x8] sm:$0xff]
    %v171 = vpack.c.bf16 %v167, %v167
    %v180 = vunpack.c.l.b16 %v159
    %v181 = vunpack.c.h.b16 %v159
    %v182 = vunpack.c.l.b16 %v160
    %v183 = vunpack.c.h.b16 %v160
    %v184 = vunpack.c.l.b16 %v161
    %v185 = vunpack.c.h.b16 %v161
    %v186 = vunpack.c.l.b16 %v162
    %v187 = vunpack.c.h.b16 %v162
    %v188 = vunpack.c.l.b16 %v163
    %v189 = vunpack.c.h.b16 %v163
    %v190 = vunpack.c.l.b16 %v164
    %v191 = vunpack.c.h.b16 %v164
    %v192 = vunpack.c.l.b16 %v165
    %v193 = vunpack.c.h.b16 %v165
    %v194 = vunpack.c.l.b16 %v166
    %v195 = vunpack.c.h.b16 %v166
    %v196 = vpack.c.b16 %v182, %v180
    %v197 = vpack.c.b16 %v183, %v181
    %v198 = vpack.c.b16 %v186, %v184
    %v199 = vpack.c.b16 %v187, %v185
    %v200 = vpack.c.b16 %v190, %v188
    %v201 = vpack.c.b16 %v191, %v189
    %v202 = vpack.c.b16 %v194, %v192
    %v203 = vpack.c.b16 %v195, %v193
    %vm212 = vcmask 523264
    %v214 = vsel %vm212, %v171, 0
    %216 = vmatpush.bf16.msra.mxu0 0
    %217 = vmatpush.bf16.msra.mxu0 0
    %218 = vmatpush.bf16.msra.mxu0 0
    %219 = vmatpush.bf16.msra.mxu0 0
    %220 = vmatpush.bf16.msra.mxu0 %v202
    %221 = vmatpush.bf16.msra.mxu0 %v200
    %222 = vmatpush.bf16.msra.mxu0 %v198
    %223 = vmatpush.bf16.msra.mxu0 %v196
    %224 = vmatmul.bf16.gmra.mxu0 %v214
    %v225 = vpop.f32.mrf.mxu0
    %v226 = vadd.f32 0.0, %v225
    %v227 = vpop.f32.mrf.mxu0
    %228 = vdwg.mxu0
    %229 = vmatpush.bf16.msra.mxu0 0
    %230 = vmatpush.bf16.msra.mxu0 0
    %231 = vmatpush.bf16.msra.mxu0 0
    %232 = vmatpush.bf16.msra.mxu0 0
    %233 = vmatpush.bf16.msra.mxu0 %v203
    %234 = vmatpush.bf16.msra.mxu0 %v201
    %235 = vmatpush.bf16.msra.mxu0 %v199
    %236 = vmatpush.bf16.msra.mxu0 %v197
    %237 = vmatmul.bf16.gmra.mxu0 %v214
    %v238 = vpop.f32.mrf.mxu0
    %v239 = vadd.f32 0.0, %v238
    %v240 = vpop.f32.mrf.mxu0
    %241 = vdwg.mxu0
    %v242 = vadd.f32 %v169, %v226
    %v243 = vadd.f32 %v170, %v239
    %v244 = vxor.u32 %v242, 2147483648
    %v245 = vxor.u32 %v243, 2147483648
    %v246 = vmul.f32 %v244, 1.442695
    %v247 = vpow.pop %v246
    %v248 = vmul.f32 %v245, 1.442695
    %v249 = vpow.pop %v248
    %v250 = vadd.f32 %v247, 1.0
    %v251 = vadd.f32 %v249, 1.0
    %v252 = vrcp.pop %v250
    %v253 = vmul.f32 %v250, %v252
    %v254 = vsub.f32 1.0, %v253
    %v255 = vmul.f32 %v252, %v254
    %v256 = vadd.f32 %v252, %v255
    %vm257 = vweird.f32 %v250
    %vm258 = vweird.f32 %v252
    %vm259 = vmor %vm257, %vm258
    %v260 = vsel %vm259, %v252, %v256
    %v261 = vand.u32 2147483647, %v250
    %vm262 = vcmp.eq.f32.partialorder %v261, 8.507059e+37
    %v263 = vand.u32 %v250, 2147483648
    %v264 = vor.u32 1.1754944e-38, %v263
    %v265 = vsel %vm262, %v264, %v260
    %v266 = vmul.f32 1.0, %v265
    %v267 = vrcp.pop %v251
    %v268 = vmul.f32 %v251, %v267
    %v269 = vsub.f32 1.0, %v268
    %v270 = vmul.f32 %v267, %v269
    %v271 = vadd.f32 %v267, %v270
    %vm272 = vweird.f32 %v251
    %vm273 = vweird.f32 %v267
    %vm274 = vmor %vm272, %vm273
    %v275 = vsel %vm274, %v267, %v271
    %v276 = vand.u32 2147483647, %v251
    %vm277 = vcmp.eq.f32.partialorder %v276, 8.507059e+37
    %v278 = vand.u32 %v251, 2147483648
    %v279 = vor.u32 1.1754944e-38, %v278
    %v280 = vsel %vm277, %v279, %v275
    %v281 = vmul.f32 1.0, %v280
    %v282 = vtanh.pop %v243
    %284 = vrot.lane.b32.xlu0 %v168, 64
    %v285 = vpop.permute.xlu0 %284
    %v287 = vmul.f32 %v266, %v285
    %v288 = vmul.f32 %v266, %v282
    %290 = vrot.lane.b32.xlu0 %v288, 64
    %v291 = vpop.permute.xlu0 %290
    %v293 = vadd.f32 %v287, %v291
    %v294 = vtanh.pop %v293
    %v295 = vmul.f32 %v281, %v294
    %s296 = scalar_lea.vmem [#allocation4], 16
    %v297 = vld [vmem:[%s296] sm:$0xff]
    %v298 = vld [vmem:[%s296 + $0x8] sm:$0xff]
    %v299 = vpack.c.bf16 %v295, %v295
    %301 = vrot.lane.b32.xlu0 %v299, 64
    %v302 = vpop.permute.xlu0 %301
    %v304 = vsel %vm212, %v302, 0
    %306 = vmatpush.bf16.msra.mxu0 0
    %307 = vmatpush.bf16.msra.mxu0 0
    %308 = vmatpush.bf16.msra.mxu0 0
    %309 = vmatpush.bf16.msra.mxu0 0
    %310 = vmatpush.bf16.msra.mxu0 %v202
    %311 = vmatpush.bf16.msra.mxu0 %v200
    %312 = vmatpush.bf16.msra.mxu0 %v198
    %313 = vmatpush.bf16.msra.mxu0 %v196
    %314 = vmatmul.bf16.gmra.mxu0 %v304
    %v315 = vpop.f32.mrf.mxu0
    %v316 = vadd.f32 0.0, %v315
    %v317 = vpop.f32.mrf.mxu0
    %318 = vdwg.mxu0
    %319 = vmatpush.bf16.msra.mxu0 0
    %320 = vmatpush.bf16.msra.mxu0 0
    %321 = vmatpush.bf16.msra.mxu0 0
    %322 = vmatpush.bf16.msra.mxu0 0
    %323 = vmatpush.bf16.msra.mxu0 %v203
    %324 = vmatpush.bf16.msra.mxu0 %v201
    %325 = vmatpush.bf16.msra.mxu0 %v199
    %326 = vmatpush.bf16.msra.mxu0 %v197
    %327 = vmatmul.bf16.gmra.mxu0 %v304
    %v328 = vpop.f32.mrf.mxu0
    %v329 = vadd.f32 0.0, %v328
    %v330 = vpop.f32.mrf.mxu0
    %331 = vdwg.mxu0
    %v332 = vadd.f32 %v297, %v316
    %v333 = vadd.f32 %v298, %v329
    %v334 = vxor.u32 %v332, 2147483648
    %v335 = vxor.u32 %v333, 2147483648
    %v336 = vmul.f32 %v334, 1.442695
    %v337 = vpow.pop %v336
    %v338 = vmul.f32 %v335, 1.442695
    %v339 = vpow.pop %v338
    %v340 = vadd.f32 %v337, 1.0
    %v341 = vadd.f32 %v339, 1.0
    %v342 = vrcp.pop %v340
    %v343 = vmul.f32 %v340, %v342
    %v344 = vsub.f32 1.0, %v343
    %v345 = vmul.f32 %v342, %v344
    %v346 = vadd.f32 %v342, %v345
    %vm347 = vweird.f32 %v340
    %vm348 = vweird.f32 %v342
    %vm349 = vmor %vm347, %vm348
    %v350 = vsel %vm349, %v342, %v346
    %v351 = vand.u32 2147483647, %v340
    %vm352 = vcmp.eq.f32.partialorder %v351, 8.507059e+37
    %v353 = vand.u32 %v340, 2147483648
    %v354 = vor.u32 1.1754944e-38, %v353
    %v355 = vsel %vm352, %v354, %v350
    %v356 = vmul.f32 1.0, %v355
    %v357 = vrcp.pop %v341
    %v358 = vmul.f32 %v341, %v357
    %v359 = vsub.f32 1.0, %v358
    %v360 = vmul.f32 %v357, %v359
    %v361 = vadd.f32 %v357, %v360
    %vm362 = vweird.f32 %v341
    %vm363 = vweird.f32 %v357
    %vm364 = vmor %vm362, %vm363
    %v365 = vsel %vm364, %v357, %v361
    %v366 = vand.u32 2147483647, %v341
    %vm367 = vcmp.eq.f32.partialorder %v366, 8.507059e+37
    %v368 = vand.u32 %v341, 2147483648
    %v369 = vor.u32 1.1754944e-38, %v368
    %v370 = vsel %vm367, %v369, %v365
    %v371 = vmul.f32 1.0, %v370
    %v372 = vtanh.pop %v333
    %v373 = vmul.f32 %v356, %v293
    %v374 = vmul.f32 %v356, %v372
    %376 = vrot.lane.b32.xlu0 %v374, 64
    %v377 = vpop.permute.xlu0 %376
    %v379 = vadd.f32 %v373, %v377
    %v380 = vtanh.pop %v379
    %v381 = vmul.f32 %v371, %v380
    %s382 = scalar_lea.vmem [#allocation4], 32
    %v383 = vld [vmem:[%s382] sm:$0xff]
    %v384 = vld [vmem:[%s382 + $0x8] sm:$0xff]
    %v385 = vpack.c.bf16 %v381, %v381
    %387 = vrot.lane.b32.xlu0 %v385, 64
    %v388 = vpop.permute.xlu0 %387
    %v390 = vsel %vm212, %v388, 0
    %392 = vmatpush.bf16.msra.mxu0 0
    %393 = vmatpush.bf16.msra.mxu0 0
    %394 = vmatpush.bf16.msra.mxu0 0
    %395 = vmatpush.bf16.msra.mxu0 0
    %396 = vmatpush.bf16.msra.mxu0 %v202
    %397 = vmatpush.bf16.msra.mxu0 %v200
    %398 = vmatpush.bf16.msra.mxu0 %v198
    %399 = vmatpush.bf16.msra.mxu0 %v196
    %400 = vmatmul.bf16.gmra.mxu0 %v390
    %v401 = vpop.f32.mrf.mxu0
    %v402 = vadd.f32 0.0, %v401
    %v403 = vpop.f32.mrf.mxu0
    %404 = vdwg.mxu0
    %405 = vmatpush.bf16.msra.mxu0 0
    %406 = vmatpush.bf16.msra.mxu0 0
    %407 = vmatpush.bf16.msra.mxu0 0
    %408 = vmatpush.bf16.msra.mxu0 0
    %409 = vmatpush.bf16.msra.mxu0 %v203
    %410 = vmatpush.bf16.msra.mxu0 %v201
    %411 = vmatpush.bf16.msra.mxu0 %v199
    %412 = vmatpush.bf16.msra.mxu0 %v197
    %413 = vmatmul.bf16.gmra.mxu0 %v390
    %v414 = vpop.f32.mrf.mxu0
    %v415 = vadd.f32 0.0, %v414
    %v416 = vpop.f32.mrf.mxu0
    %417 = vdwg.mxu0
    %v418 = vadd.f32 %v383, %v402
    %v419 = vadd.f32 %v384, %v415
    %v420 = vxor.u32 %v418, 2147483648
    %v421 = vxor.u32 %v419, 2147483648
    %v422 = vmul.f32 %v420, 1.442695
    %v423 = vpow.pop %v422
    %v424 = vmul.f32 %v421, 1.442695
    %v425 = vpow.pop %v424
    %v426 = vadd.f32 %v423, 1.0
    %v427 = vadd.f32 %v425, 1.0
    %v428 = vrcp.pop %v426
    %v429 = vmul.f32 %v426, %v428
    %v430 = vsub.f32 1.0, %v429
    %v431 = vmul.f32 %v428, %v430
    %v432 = vadd.f32 %v428, %v431
    %vm433 = vweird.f32 %v426
    %vm434 = vweird.f32 %v428
    %vm435 = vmor %vm433, %vm434
    %v436 = vsel %vm435, %v428, %v432
    %v437 = vand.u32 2147483647, %v426
    %vm438 = vcmp.eq.f32.partialorder %v437, 8.507059e+37
    %v439 = vand.u32 %v426, 2147483648
    %v440 = vor.u32 1.1754944e-38, %v439
    %v441 = vsel %vm438, %v440, %v436
    %v442 = vmul.f32 1.0, %v441
    %v443 = vrcp.pop %v427
    %v444 = vmul.f32 %v427, %v443
    %v445 = vsub.f32 1.0, %v444
    %v446 = vmul.f32 %v443, %v445
    %v447 = vadd.f32 %v443, %v446
    %vm448 = vweird.f32 %v427
    %vm449 = vweird.f32 %v443
    %vm450 = vmor %vm448, %vm449
    %v451 = vsel %vm450, %v443, %v447
    %v452 = vand.u32 2147483647, %v427
    %vm453 = vcmp.eq.f32.partialorder %v452, 8.507059e+37
    %v454 = vand.u32 %v427, 2147483648
    %v455 = vor.u32 1.1754944e-38, %v454
    %v456 = vsel %vm453, %v455, %v451
    %v457 = vmul.f32 1.0, %v456
    %v458 = vtanh.pop %v419
    %v459 = vmul.f32 %v442, %v379
    %v460 = vmul.f32 %v442, %v458
    %462 = vrot.lane.b32.xlu0 %v460, 64
    %v463 = vpop.permute.xlu0 %462
    %v465 = vadd.f32 %v459, %v463
    %v466 = vtanh.pop %v465
    %v467 = vmul.f32 %v457, %v466
    %s468 = scalar_lea.vmem [#allocation4], 48
    %v469 = vld [vmem:[%s468] sm:$0xff]
    %v470 = vld [vmem:[%s468 + $0x8] sm:$0xff]
    %v471 = vpack.c.bf16 %v467, %v467
    %473 = vrot.lane.b32.xlu0 %v471, 64
    %v474 = vpop.permute.xlu0 %473
    %v476 = vsel %vm212, %v474, 0
    %478 = vmatpush.bf16.msra.mxu0 0
    %479 = vmatpush.bf16.msra.mxu0 0
    %480 = vmatpush.bf16.msra.mxu0 0
    %481 = vmatpush.bf16.msra.mxu0 0
    %482 = vmatpush.bf16.msra.mxu0 %v202
    %483 = vmatpush.bf16.msra.mxu0 %v200
    %484 = vmatpush.bf16.msra.mxu0 %v198
    %485 = vmatpush.bf16.msra.mxu0 %v196
    %486 = vmatmul.bf16.gmra.mxu0 %v476
    %v487 = vpop.f32.mrf.mxu0
    %v488 = vadd.f32 0.0, %v487
    %v489 = vpop.f32.mrf.mxu0
    %490 = vdwg.mxu0
    %491 = vmatpush.bf16.msra.mxu0 0
    %492 = vmatpush.bf16.msra.mxu0 0
    %493 = vmatpush.bf16.msra.mxu0 0
    %494 = vmatpush.bf16.msra.mxu0 0
    %495 = vmatpush.bf16.msra.mxu0 %v203
    %496 = vmatpush.bf16.msra.mxu0 %v201
    %497 = vmatpush.bf16.msra.mxu0 %v199
    %498 = vmatpush.bf16.msra.mxu0 %v197
    %499 = vmatmul.bf16.gmra.mxu0 %v476
    %v500 = vpop.f32.mrf.mxu0
    %v501 = vadd.f32 0.0, %v500
    %v502 = vpop.f32.mrf.mxu0
    %503 = vdwg.mxu0
    %v504 = vadd.f32 %v469, %v488
    %v505 = vadd.f32 %v470, %v501
    %v506 = vxor.u32 %v504, 2147483648
    %v507 = vxor.u32 %v505, 2147483648
    %v508 = vmul.f32 %v506, 1.442695
    %v509 = vpow.pop %v508
    %v510 = vmul.f32 %v507, 1.442695
    %v511 = vpow.pop %v510
    %v512 = vadd.f32 %v509, 1.0
    %v513 = vadd.f32 %v511, 1.0
    %v514 = vrcp.pop %v512
    %v515 = vmul.f32 %v512, %v514
    %v516 = vsub.f32 1.0, %v515
    %v517 = vmul.f32 %v514, %v516
    %v518 = vadd.f32 %v514, %v517
    %vm519 = vweird.f32 %v512
    %vm520 = vweird.f32 %v514
    %vm521 = vmor %vm519, %vm520
    %v522 = vsel %vm521, %v514, %v518
    %v523 = vand.u32 2147483647, %v512
    %vm524 = vcmp.eq.f32.partialorder %v523, 8.507059e+37
    %v525 = vand.u32 %v512, 2147483648
    %v526 = vor.u32 1.1754944e-38, %v525
    %v527 = vsel %vm524, %v526, %v522
    %v528 = vmul.f32 1.0, %v527
    %v529 = vrcp.pop %v513
    %v530 = vmul.f32 %v513, %v529
    %v531 = vsub.f32 1.0, %v530
    %v532 = vmul.f32 %v529, %v531
    %v533 = vadd.f32 %v529, %v532
    %vm534 = vweird.f32 %v513
    %vm535 = vweird.f32 %v529
    %vm536 = vmor %vm534, %vm535
    %v537 = vsel %vm536, %v529, %v533
    %v538 = vand.u32 2147483647, %v513
    %vm539 = vcmp.eq.f32.partialorder %v538, 8.507059e+37
    %v540 = vand.u32 %v513, 2147483648
    %v541 = vor.u32 1.1754944e-38, %v540
    %v542 = vsel %vm539, %v541, %v537
    %v543 = vmul.f32 1.0, %v542
    %v544 = vtanh.pop %v505
    %v545 = vmul.f32 %v528, %v465
    %v546 = vmul.f32 %v528, %v544
    %548 = vrot.lane.b32.xlu0 %v546, 64
    %v549 = vpop.permute.xlu0 %548
    %v551 = vadd.f32 %v545, %v549
    %v552 = vtanh.pop %v551
    %v553 = vmul.f32 %v543, %v552
    %s554 = scalar_lea.vmem [#allocation4], 64
    %v555 = vld [vmem:[%s554] sm:$0xff]
    %v556 = vld [vmem:[%s554 + $0x8] sm:$0xff]
    %v557 = vpack.c.bf16 %v553, %v553
    %559 = vrot.lane.b32.xlu0 %v557, 64
    %v560 = vpop.permute.xlu0 %559
    %v562 = vsel %vm212, %v560, 0
    %564 = vmatpush.bf16.msra.mxu0 0
    %565 = vmatpush.bf16.msra.mxu0 0
    %566 = vmatpush.bf16.msra.mxu0 0
    %567 = vmatpush.bf16.msra.mxu0 0
    %568 = vmatpush.bf16.msra.mxu0 %v202
    %569 = vmatpush.bf16.msra.mxu0 %v200
    %570 = vmatpush.bf16.msra.mxu0 %v198
    %571 = vmatpush.bf16.msra.mxu0 %v196
    %572 = vmatmul.bf16.gmra.mxu0 %v562
    %v573 = vpop.f32.mrf.mxu0
    %v574 = vadd.f32 0.0, %v573
    %v575 = vpop.f32.mrf.mxu0
    %576 = vdwg.mxu0
    %577 = vmatpush.bf16.msra.mxu0 0
    %578 = vmatpush.bf16.msra.mxu0 0
    %579 = vmatpush.bf16.msra.mxu0 0
    %580 = vmatpush.bf16.msra.mxu0 0
    %581 = vmatpush.bf16.msra.mxu0 %v203
    %582 = vmatpush.bf16.msra.mxu0 %v201
    %583 = vmatpush.bf16.msra.mxu0 %v199
    %584 = vmatpush.bf16.msra.mxu0 %v197
    %585 = vmatmul.bf16.gmra.mxu0 %v562
    %v586 = vpop.f32.mrf.mxu0
    %v587 = vadd.f32 0.0, %v586
    %v588 = vpop.f32.mrf.mxu0
    %589 = vdwg.mxu0
    %v590 = vadd.f32 %v555, %v574
    %v591 = vadd.f32 %v556, %v587
    %v592 = vxor.u32 %v590, 2147483648
    %v593 = vxor.u32 %v591, 2147483648
    %v594 = vmul.f32 %v592, 1.442695
    %v595 = vpow.pop %v594
    %v596 = vmul.f32 %v593, 1.442695
    %v597 = vpow.pop %v596
    %v598 = vadd.f32 %v595, 1.0
    %v599 = vadd.f32 %v597, 1.0
    %v600 = vrcp.pop %v598
    %v601 = vmul.f32 %v598, %v600
    %v602 = vsub.f32 1.0, %v601
    %v603 = vmul.f32 %v600, %v602
    %v604 = vadd.f32 %v600, %v603
    %vm605 = vweird.f32 %v598
    %vm606 = vweird.f32 %v600
    %vm607 = vmor %vm605, %vm606
    %v608 = vsel %vm607, %v600, %v604
    %v609 = vand.u32 2147483647, %v598
    %vm610 = vcmp.eq.f32.partialorder %v609, 8.507059e+37
    %v611 = vand.u32 %v598, 2147483648
    %v612 = vor.u32 1.1754944e-38, %v611
    %v613 = vsel %vm610, %v612, %v608
    %v614 = vmul.f32 1.0, %v613
    %v615 = vrcp.pop %v599
    %v616 = vmul.f32 %v599, %v615
    %v617 = vsub.f32 1.0, %v616
    %v618 = vmul.f32 %v615, %v617
    %v619 = vadd.f32 %v615, %v618
    %vm620 = vweird.f32 %v599
    %vm621 = vweird.f32 %v615
    %vm622 = vmor %vm620, %vm621
    %v623 = vsel %vm622, %v615, %v619
    %v624 = vand.u32 2147483647, %v599
    %vm625 = vcmp.eq.f32.partialorder %v624, 8.507059e+37
    %v626 = vand.u32 %v599, 2147483648
    %v627 = vor.u32 1.1754944e-38, %v626
    %v628 = vsel %vm625, %v627, %v623
    %v629 = vmul.f32 1.0, %v628
    %v630 = vtanh.pop %v591
    %v631 = vmul.f32 %v614, %v551
    %v632 = vmul.f32 %v614, %v630
    %634 = vrot.lane.b32.xlu0 %v632, 64
    %v635 = vpop.permute.xlu0 %634
    %v637 = vadd.f32 %v631, %v635
    %v638 = vtanh.pop %v637
    %v639 = vmul.f32 %v629, %v638
    %s640 = scalar_lea.vmem [#allocation4], 80
    %v641 = vld [vmem:[%s640] sm:$0xff]
    %v642 = vld [vmem:[%s640 + $0x8] sm:$0xff]
    %v643 = vpack.c.bf16 %v639, %v639
    %645 = vrot.lane.b32.xlu0 %v643, 64
    %v646 = vpop.permute.xlu0 %645
    %v648 = vsel %vm212, %v646, 0
    %650 = vmatpush.bf16.msra.mxu0 0
    %651 = vmatpush.bf16.msra.mxu0 0
    %652 = vmatpush.bf16.msra.mxu0 0
    %653 = vmatpush.bf16.msra.mxu0 0
    %654 = vmatpush.bf16.msra.mxu0 %v202
    %655 = vmatpush.bf16.msra.mxu0 %v200
    %656 = vmatpush.bf16.msra.mxu0 %v198
    %657 = vmatpush.bf16.msra.mxu0 %v196
    %658 = vmatmul.bf16.gmra.mxu0 %v648
    %v659 = vpop.f32.mrf.mxu0
    %v660 = vadd.f32 0.0, %v659
    %v661 = vpop.f32.mrf.mxu0
    %662 = vdwg.mxu0
    %663 = vmatpush.bf16.msra.mxu0 0
    %664 = vmatpush.bf16.msra.mxu0 0
    %665 = vmatpush.bf16.msra.mxu0 0
    %666 = vmatpush.bf16.msra.mxu0 0
    %667 = vmatpush.bf16.msra.mxu0 %v203
    %668 = vmatpush.bf16.msra.mxu0 %v201
    %669 = vmatpush.bf16.msra.mxu0 %v199
    %670 = vmatpush.bf16.msra.mxu0 %v197
    %671 = vmatmul.bf16.gmra.mxu0 %v648
    %v672 = vpop.f32.mrf.mxu0
    %v673 = vadd.f32 0.0, %v672
    %v674 = vpop.f32.mrf.mxu0
    %675 = vdwg.mxu0
    %v676 = vadd.f32 %v641, %v660
    %v677 = vadd.f32 %v642, %v673
    %v678 = vxor.u32 %v676, 2147483648
    %v679 = vxor.u32 %v677, 2147483648
    %v680 = vmul.f32 %v678, 1.442695
    %v681 = vpow.pop %v680
    %v682 = vmul.f32 %v679, 1.442695
    %v683 = vpow.pop %v682
    %v684 = vadd.f32 %v681, 1.0
    %v685 = vadd.f32 %v683, 1.0
    %v686 = vrcp.pop %v684
    %v687 = vmul.f32 %v684, %v686
    %v688 = vsub.f32 1.0, %v687
    %v689 = vmul.f32 %v686, %v688
    %v690 = vadd.f32 %v686, %v689
    %vm691 = vweird.f32 %v684
    %vm692 = vweird.f32 %v686
    %vm693 = vmor %vm691, %vm692
    %v694 = vsel %vm693, %v686, %v690
    %v695 = vand.u32 2147483647, %v684
    %vm696 = vcmp.eq.f32.partialorder %v695, 8.507059e+37
    %v697 = vand.u32 %v684, 2147483648
    %v698 = vor.u32 1.1754944e-38, %v697
    %v699 = vsel %vm696, %v698, %v694
    %v700 = vmul.f32 1.0, %v699
    %v701 = vrcp.pop %v685
    %v702 = vmul.f32 %v685, %v701
    %v703 = vsub.f32 1.0, %v702
    %v704 = vmul.f32 %v701, %v703
    %v705 = vadd.f32 %v701, %v704
    %vm706 = vweird.f32 %v685
    %vm707 = vweird.f32 %v701
    %vm708 = vmor %vm706, %vm707
    %v709 = vsel %vm708, %v701, %v705
    %v710 = vand.u32 2147483647, %v685
    %vm711 = vcmp.eq.f32.partialorder %v710, 8.507059e+37
    %v712 = vand.u32 %v685, 2147483648
    %v713 = vor.u32 1.1754944e-38, %v712
    %v714 = vsel %vm711, %v713, %v709
    %v715 = vmul.f32 1.0, %v714
    %v716 = vtanh.pop %v677
    %v717 = vmul.f32 %v700, %v637
    %v718 = vmul.f32 %v700, %v716
    %720 = vrot.lane.b32.xlu0 %v718, 64
    %v721 = vpop.permute.xlu0 %720
    %v723 = vadd.f32 %v717, %v721
    %v724 = vtanh.pop %v723
    %v725 = vmul.f32 %v715, %v724
    %s726 = scalar_lea.vmem [#allocation4], 96
    %v727 = vld [vmem:[%s726] sm:$0xff]
    %v728 = vld [vmem:[%s726 + $0x8] sm:$0xff]
    %v729 = vpack.c.bf16 %v725, %v725
    %731 = vrot.lane.b32.xlu0 %v729, 64
    %v732 = vpop.permute.xlu0 %731
    %v734 = vsel %vm212, %v732, 0
    %736 = vmatpush.bf16.msra.mxu0 0
    %737 = vmatpush.bf16.msra.mxu0 0
    %738 = vmatpush.bf16.msra.mxu0 0
    %739 = vmatpush.bf16.msra.mxu0 0
    %740 = vmatpush.bf16.msra.mxu0 %v202
    %741 = vmatpush.bf16.msra.mxu0 %v200
    %742 = vmatpush.bf16.msra.mxu0 %v198
    %743 = vmatpush.bf16.msra.mxu0 %v196
    %744 = vmatmul.bf16.gmra.mxu0 %v734
    %v745 = vpop.f32.mrf.mxu0
    %v746 = vadd.f32 0.0, %v745
    %v747 = vpop.f32.mrf.mxu0
    %748 = vdwg.mxu0
    %749 = vmatpush.bf16.msra.mxu0 0
    %750 = vmatpush.bf16.msra.mxu0 0
    %751 = vmatpush.bf16.msra.mxu0 0
    %752 = vmatpush.bf16.msra.mxu0 0
    %753 = vmatpush.bf16.msra.mxu0 %v203
    %754 = vmatpush.bf16.msra.mxu0 %v201
    %755 = vmatpush.bf16.msra.mxu0 %v199
    %756 = vmatpush.bf16.msra.mxu0 %v197
    %757 = vmatmul.bf16.gmra.mxu0 %v734
    %v758 = vpop.f32.mrf.mxu0
    %v759 = vadd.f32 0.0, %v758
    %v760 = vpop.f32.mrf.mxu0
    %761 = vdwg.mxu0
    %v762 = vadd.f32 %v727, %v746
    %v763 = vadd.f32 %v728, %v759
    %v764 = vxor.u32 %v762, 2147483648
    %v765 = vxor.u32 %v763, 2147483648
    %v766 = vmul.f32 %v764, 1.442695
    %v767 = vpow.pop %v766
    %v768 = vmul.f32 %v765, 1.442695
    %v769 = vpow.pop %v768
    %v770 = vadd.f32 %v767, 1.0
    %v771 = vadd.f32 %v769, 1.0
    %v772 = vrcp.pop %v770
    %v773 = vmul.f32 %v770, %v772
    %v774 = vsub.f32 1.0, %v773
    %v775 = vmul.f32 %v772, %v774
    %v776 = vadd.f32 %v772, %v775
    %vm777 = vweird.f32 %v770
    %vm778 = vweird.f32 %v772
    %vm779 = vmor %vm777, %vm778
    %v780 = vsel %vm779, %v772, %v776
    %v781 = vand.u32 2147483647, %v770
    %vm782 = vcmp.eq.f32.partialorder %v781, 8.507059e+37
    %v783 = vand.u32 %v770, 2147483648
    %v784 = vor.u32 1.1754944e-38, %v783
    %v785 = vsel %vm782, %v784, %v780
    %v786 = vmul.f32 1.0, %v785
    %v787 = vrcp.pop %v771
    %v788 = vmul.f32 %v771, %v787
    %v789 = vsub.f32 1.0, %v788
    %v790 = vmul.f32 %v787, %v789
    %v791 = vadd.f32 %v787, %v790
    %vm792 = vweird.f32 %v771
    %vm793 = vweird.f32 %v787
    %vm794 = vmor %vm792, %vm793
    %v795 = vsel %vm794, %v787, %v791
    %v796 = vand.u32 2147483647, %v771
    %vm797 = vcmp.eq.f32.partialorder %v796, 8.507059e+37
    %v798 = vand.u32 %v771, 2147483648
    %v799 = vor.u32 1.1754944e-38, %v798
    %v800 = vsel %vm797, %v799, %v795
    %v801 = vmul.f32 1.0, %v800
    %v802 = vtanh.pop %v763
    %v803 = vmul.f32 %v786, %v723
    %v804 = vmul.f32 %v786, %v802
    %806 = vrot.lane.b32.xlu0 %v804, 64
    %v807 = vpop.permute.xlu0 %806
    %v809 = vadd.f32 %v803, %v807
    %v810 = vtanh.pop %v809
    %v811 = vmul.f32 %v801, %v810
    %s812 = scalar_lea.vmem [#allocation4], 112
    %v813 = vld [vmem:[%s812] sm:$0xff]
    %v814 = vld [vmem:[%s812 + $0x8] sm:$0xff]
    %v815 = vpack.c.bf16 %v811, %v811
    %817 = vrot.lane.b32.xlu0 %v815, 64
    %v818 = vpop.permute.xlu0 %817
    %v820 = vsel %vm212, %v818, 0
    %822 = vmatpush.bf16.msra.mxu0 0
    %823 = vmatpush.bf16.msra.mxu0 0
    %824 = vmatpush.bf16.msra.mxu0 0
    %825 = vmatpush.bf16.msra.mxu0 0
    %826 = vmatpush.bf16.msra.mxu0 %v202
    %827 = vmatpush.bf16.msra.mxu0 %v200
    %828 = vmatpush.bf16.msra.mxu0 %v198
    %829 = vmatpush.bf16.msra.mxu0 %v196
    %830 = vmatmul.bf16.gmra.mxu0 %v820
    %v831 = vpop.f32.mrf.mxu0
    %v832 = vadd.f32 0.0, %v831
    %v833 = vpop.f32.mrf.mxu0
    %834 = vdwg.mxu0
    %835 = vmatpush.bf16.msra.mxu0 0
    %836 = vmatpush.bf16.msra.mxu0 0
    %837 = vmatpush.bf16.msra.mxu0 0
    %838 = vmatpush.bf16.msra.mxu0 0
    %839 = vmatpush.bf16.msra.mxu0 %v203
    %840 = vmatpush.bf16.msra.mxu0 %v201
    %841 = vmatpush.bf16.msra.mxu0 %v199
    %842 = vmatpush.bf16.msra.mxu0 %v197
    %843 = vmatmul.bf16.gmra.mxu0 %v820
    %v844 = vpop.f32.mrf.mxu0
    %v845 = vadd.f32 0.0, %v844
    %v846 = vpop.f32.mrf.mxu0
    %847 = vdwg.mxu0
    %v848 = vadd.f32 %v813, %v832
    %v849 = vadd.f32 %v814, %v845
    %v850 = vxor.u32 %v848, 2147483648
    %v851 = vxor.u32 %v849, 2147483648
    %v852 = vmul.f32 %v850, 1.442695
    %v853 = vpow.pop %v852
    %v854 = vmul.f32 %v851, 1.442695
    %v855 = vpow.pop %v854
    %v856 = vadd.f32 %v853, 1.0
    %v857 = vadd.f32 %v855, 1.0
    %v858 = vrcp.pop %v856
    %v859 = vmul.f32 %v856, %v858
    %v860 = vsub.f32 1.0, %v859
    %v861 = vmul.f32 %v858, %v860
    %v862 = vadd.f32 %v858, %v861
    %vm863 = vweird.f32 %v856
    %vm864 = vweird.f32 %v858
    %vm865 = vmor %vm863, %vm864
    %v866 = vsel %vm865, %v858, %v862
    %v867 = vand.u32 2147483647, %v856
    %vm868 = vcmp.eq.f32.partialorder %v867, 8.507059e+37
    %v869 = vand.u32 %v856, 2147483648
    %v870 = vor.u32 1.1754944e-38, %v869
    %v871 = vsel %vm868, %v870, %v866
    %v872 = vmul.f32 1.0, %v871
    %v873 = vrcp.pop %v857
    %v874 = vmul.f32 %v857, %v873
    %v875 = vsub.f32 1.0, %v874
    %v876 = vmul.f32 %v873, %v875
    %v877 = vadd.f32 %v873, %v876
    %vm878 = vweird.f32 %v857
    %vm879 = vweird.f32 %v873
    %vm880 = vmor %vm878, %vm879
    %v881 = vsel %vm880, %v873, %v877
    %v882 = vand.u32 2147483647, %v857
    %vm883 = vcmp.eq.f32.partialorder %v882, 8.507059e+37
    %v884 = vand.u32 %v857, 2147483648
    %v885 = vor.u32 1.1754944e-38, %v884
    %v886 = vsel %vm883, %v885, %v881
    %v887 = vmul.f32 1.0, %v886
    %v888 = vtanh.pop %v849
    %v889 = vmul.f32 %v872, %v809
    %v890 = vmul.f32 %v872, %v888
    %892 = vrot.lane.b32.xlu0 %v890, 64
    %v893 = vpop.permute.xlu0 %892
    %v895 = vadd.f32 %v889, %v893
    %v896 = vtanh.pop %v895
    %v897 = vmul.f32 %v887, %v896
    %899 = vrot.lane.b32.xlu0 %v897, 64
    %v900 = vpop.permute.xlu0 %899
    %902 = vst.msk [vmem:[#allocation2] sm:$0xff] %vm212, %v900
    %904 = vrot.lane.b32.xlu0 %v895, 64
    %v905 = vpop.permute.xlu0 %904
    %907 = vst.msk [vmem:[#allocation3] sm:$0xff] %vm212, %v905
    // Predicated region
    $region38: #{tpu_custom_call.1} parent=1 // pred_check
      %p908 = pneg %p35
    $region39: #{tpu_custom_call.1} parent=1 // pred_check_branch
      %910 = sbr.rel (%p908) target = $region41
    $region40: #{tpu_custom_call.1} parent=1 // pred_region
      %v911 = vpack.c.bf16 %v897, %v897
      %v912 = vld [vmem:[%s3] sm:$0xf]
      %v913 = vld [vmem:[%s3 + $0x4] sm:$0xf]
      %v914 = vld [vmem:[%s3 + $0x8] sm:$0xf]
      %v915 = vld [vmem:[%s3 + $0xc] sm:$0xf]
      %v916 = vld [vmem:[%s3 + $0x10] sm:$0xf]
      %v917 = vld [vmem:[%s3 + $0x14] sm:$0xf]
      %v918 = vld [vmem:[%s3 + $0x18] sm:$0xf]
      %v919 = vld [vmem:[%s3 + $0x1c] sm:$0xf]
      %v920 = vld [vmem:[%s5] sm:$0x1]
      %v922 = vperm.slane %v920, 0
      %925 = vrot.lane.b32.xlu0 %v911, 64
      %v926 = vpop.permute.xlu0 %925
      %v935 = vunpack.c.l.b16 %v912
      %v936 = vunpack.c.l.b16 %v913
      %v937 = vunpack.c.l.b16 %v914
      %v938 = vunpack.c.l.b16 %v915
      %v939 = vunpack.c.l.b16 %v916
      %v940 = vunpack.c.l.b16 %v917
      %v941 = vunpack.c.l.b16 %v918
      %v942 = vunpack.c.l.b16 %v919
      %v943 = vpack.c.b16 %v936, %v935
      %v944 = vpack.c.b16 %v938, %v937
      %v945 = vpack.c.b16 %v940, %v939
      %v946 = vpack.c.b16 %v942, %v941
      %v952 = vsel %vm212, %v926, 0
      %954 = vmatpush.bf16.msra.mxu0 0
      %955 = vmatpush.bf16.msra.mxu0 0
      %956 = vmatpush.bf16.msra.mxu0 0
      %957 = vmatpush.bf16.msra.mxu0 0
      %958 = vmatpush.bf16.msra.mxu0 %v946
      %959 = vmatpush.bf16.msra.mxu0 %v945
      %960 = vmatpush.bf16.msra.mxu0 %v944
      %961 = vmatpush.bf16.msra.mxu0 %v943
      %962 = vmatmul.bf16.gmra.mxu0 %v952
      %v963 = vpop.f32.mrf.mxu0
      %v964 = vadd.f32 %v922, %v963
      %v965 = vpop.f32.mrf.mxu0
      %966 = vdwg.mxu0
      %vm967 = vcmask 80896
      %968 = vst.msk [vmem:[#allocation5] sm:$0xff] %vm967, %v964
      %969 = vst.msk [vmem:[#allocation7] sm:$0xff] %vm212, %v900
      %970 = vst.msk [vmem:[#allocation9] sm:$0xff] %vm212, %v905
    $region41: #{tpu_custom_call.1} parent=1 // pred_fallthru
      _
    // Predicated region
    $region42: #{tpu_custom_call.1} parent=1 // pred_check
      _
    $region43: #{tpu_custom_call.1} parent=1 // pred_check_branch
      %972 = sbr.rel (0) target = $region45
    $region44: #{tpu_custom_call.1} parent=1 // pred_region
      %974 = vsyncadd [#allocation6], 0
      %s976 = sshll.u32 [#allocation5], 4
      %s977 = int_to_ptr.vmem [resolvable:$true] %s976
      %s978 = sshll.u32 %s8, 4
      %s979 = int_to_ptr.hbm [resolvable:$true] %s978
      %981 = dma.vmem_to_hbm [thread:$0]  %s977, 128, %s979, [#allocation6]
    $region45: #{tpu_custom_call.1} parent=1 // pred_fallthru
      _
    // Predicated region
    $region46: #{tpu_custom_call.1} parent=1 // pred_check
      _
    $region47: #{tpu_custom_call.1} parent=1 // pred_check_branch
      %983 = sbr.rel (0) target = $region49
    $region48: #{tpu_custom_call.1} parent=1 // pred_region
      %985 = vsyncadd [#allocation8], 0
      %s987 = sshll.u32 [#allocation7], 4
      %s988 = int_to_ptr.vmem [resolvable:$true] %s987
      %s989 = sshll.u32 %s9, 4
      %s990 = int_to_ptr.hbm [resolvable:$true] %s989
      %992 = dma.vmem_to_hbm [thread:$0]  %s988, 128, %s990, [#allocation8]
    $region49: #{tpu_custom_call.1} parent=1 // pred_fallthru
      _
    // Predicated region
    $region50: #{tpu_custom_call.1} parent=1 // pred_check
      _
    $region51: #{tpu_custom_call.1} parent=1 // pred_check_branch
      %994 = sbr.rel (0) target = $region53
    $region52: #{tpu_custom_call.1} parent=1 // pred_region
      %996 = vsyncadd [#allocation8], 0
      %s998 = sshll.u32 [#allocation9], 4
      %s999 = int_to_ptr.vmem [resolvable:$true] %s998
      %s1000 = sshll.u32 %s10, 4
      %s1001 = int_to_ptr.hbm [resolvable:$true] %s1000
      %1003 = dma.vmem_to_hbm [thread:$0]  %s999, 128, %s1001, [#allocation8]
    $region53: #{tpu_custom_call.1} parent=1 // pred_fallthru
      _
    // Predicated region
    $region54: #{tpu_custom_call.1} parent=1 // pred_check
      _
    $region55: #{tpu_custom_call.1} parent=1 // pred_check_branch
      %1005 = sbr.rel (0) target = $region57
    $region56: #{tpu_custom_call.1} parent=1 // pred_region
      %1007 = dma.done [#allocation6], 128
    $region57: #{tpu_custom_call.1} parent=1 // pred_fallthru
      _
    // Predicated region
    $region58: #{tpu_custom_call.1} parent=1 // pred_check
      _
    $region59: #{tpu_custom_call.1} parent=1 // pred_check_branch
      %1009 = sbr.rel (0) target = $region61
    $region60: #{tpu_custom_call.1} parent=1 // pred_region
      %1011 = dma.done [#allocation8], 128
    $region61: #{tpu_custom_call.1} parent=1 // pred_fallthru
      _
    // Predicated region
    $region62: #{tpu_custom_call.1} parent=1 // pred_check
      _
    $region63: #{tpu_custom_call.1} parent=1 // pred_check_branch
      %1013 = sbr.rel (0) target = $region65
    $region64: #{tpu_custom_call.1} parent=1 // pred_region
      %1015 = dma.done [#allocation8], 128
    $region65: #{tpu_custom_call.1} parent=1 // pred_fallthru
      _
    %1016 = vsyncpa [#allocation6], 1
    %1017 = vsyncpa [#allocation8], 1

</llo_original>
